<compile_context>
chip_gen: v7x
topology: tpu7x:2x2x1
jax: 0.10.0
libtpu: 0.0.40
codegen_flags: <defaults>
</compile_context>

<pallas_src>
import functools

import jax
import jax.numpy as jnp
from jax.experimental import pallas as pl
from jax.experimental.pallas import tpu as pltpu


# ----------------------------- Pallas kernels ------------------------------


def _inproj_kernel(x_ref, w_ref, b_ref, g_ref):
    """Both-direction input projection: gates = sum_p x[p] @ W[p] + b.

    x_ref: (P, RC, Din)   -- P feature "parts" (1 for embeddings, 2 for fwd/bwd planes)
    w_ref: (P, Din, 8H)   -- per-part weights, fwd|bwd gate blocks concatenated on lanes
    b_ref: (1, 8H)        -- (b_ih + b_hh) for both directions
    g_ref: (RC, 8H)       -- output gate pre-activations
    """
    parts = x_ref.shape[0]
    acc = jnp.dot(x_ref[0], w_ref[0], preferred_element_type=jnp.float32)
    for p in range(1, parts):
        acc = acc + jnp.dot(x_ref[p], w_ref[p], preferred_element_type=jnp.float32)
    g_ref[...] = acc + b_ref[...]


def _bilstm_kernel(gx_ref, whh_ref, out_ref, h_sc, c_sc, *, hidden, t_chunk):
    """Fused bidirectional LSTM recurrence.

    grid = (direction d, time-chunk s).  gx_ref holds the precomputed X@W_ih + b gates
    for this direction/chunk (selected by the lane-block index d in the BlockSpec),
    whh_ref the (H, 4H) recurrent weights for this direction.  The backward direction
    reads/writes the chunk with reversed local indices; chunk order itself is reversed
    via the index_map, so no flips are materialized in HBM.
    """
    d = pl.program_id(0)
    s = pl.program_id(1)

    @pl.when(s == 0)
    def _():
        h_sc[...] = jnp.zeros_like(h_sc)
        c_sc[...] = jnp.zeros_like(c_sc)

    whh = whh_ref[...]            # (H, 4H), loaded once per chunk
    H = hidden

    def step(k, carry):
        h, c = carry
        # forward: local index k ; backward: local index t_chunk-1-k
        j = (1 - d) * k + d * (t_chunk - 1 - k)
        g = gx_ref[j] + jnp.dot(h, whh, preferred_element_type=jnp.float32)   # (B, 4H)
        i_g = jax.nn.sigmoid(g[:, 0 * H:1 * H])
        f_g = jax.nn.sigmoid(g[:, 1 * H:2 * H])
        g_g = jnp.tanh(g[:, 2 * H:3 * H])
        o_g = jax.nn.sigmoid(g[:, 3 * H:4 * H])
        c_new = f_g * c + i_g * g_g
        h_new = o_g * jnp.tanh(c_new)
        out_ref[j] = h_new
        return h_new, c_new

    h_fin, c_fin = jax.lax.fori_loop(
        0, t_chunk, step, (h_sc[...], c_sc[...]), unroll=True)
    h_sc[...] = h_fin
    c_sc[...] = c_fin


def _fc_kernel(hf_ref, hb_ref, w_ref, b_ref, o_ref):
    """logits = h_fwd @ W[0] + h_bwd @ W[1] + b  (concat-free classifier head)."""
    o_ref[...] = (
        jnp.dot(hf_ref[...], w_ref[0], preferred_element_type=jnp.float32)
        + jnp.dot(hb_ref[...], w_ref[1], preferred_element_type=jnp.float32)
        + b_ref[...]
    )


# ----------------------------- wrappers ------------------------------------


def input_projection(x_parts, w_ih, bias):
    """x_parts: (P, M, Din); w_ih: (P, Din, 8H); bias: (1, 8H) -> gates (M, 8H)."""
    P, M, Din = x_parts.shape
    G8 = w_ih.shape[-1]
    RC = M                 # row chunk; at realistic sizes tile rows (e.g. 256/512)
    nrc = M // RC
    return pl.pallas_call(
        _inproj_kernel,
        out_shape=jax.ShapeDtypeStruct((M, G8), jnp.float32),
        grid_spec=pltpu.PrefetchScalarGridSpec(
            num_scalar_prefetch=0,
            grid=(nrc,),
            in_specs=[
                pl.BlockSpec((P, RC, Din), lambda r: (0, r, 0)),
                pl.BlockSpec((P, Din, G8), lambda r: (0, 0, 0)),
                pl.BlockSpec((1, G8), lambda r: (0, 0)),
            ],
            out_specs=pl.BlockSpec((RC, G8), lambda r: (r, 0)),
        ),
        compiler_params=pltpu.CompilerParams(
            dimension_semantics=("parallel",)),
    )(x_parts, w_ih, bias)


def bilstm_recurrence(gx, w_hh, t_chunk):
    """gx: (T, B, 8H) precomputed input gates (fwd|bwd on lanes); w_hh: (2, H, 4H)
    -> hiddens (2, T, B, H)."""
    T, B, G8 = gx.shape
    H = w_hh.shape[1]
    G4 = 4 * H
    assert T % t_chunk == 0
    nch = T // t_chunk

    def gx_map(d, s):
        # forward walks chunks 0..nch-1, backward walks nch-1..0;
        # lane block d picks this direction's 4H gate slab (no HBM split needed).
        return ((1 - d) * s + d * (nch - 1 - s), 0, d)

    def out_map(d, s):
        return (d, (1 - d) * s + d * (nch - 1 - s), 0, 0)

    kernel = functools.partial(_bilstm_kernel, hidden=H, t_chunk=t_chunk)
    return pl.pallas_call(
        kernel,
        out_shape=jax.ShapeDtypeStruct((2, T, B, H), jnp.float32),
        grid_spec=pltpu.PrefetchScalarGridSpec(
            num_scalar_prefetch=0,
            grid=(2, nch),
            in_specs=[
                pl.BlockSpec((t_chunk, B, G4), gx_map),                # gate chunk
                pl.BlockSpec((None, H, G4), lambda d, s: (d, 0, 0)),   # W_hh^T
            ],
            out_specs=pl.BlockSpec((None, t_chunk, B, H), out_map),
            scratch_shapes=[
                pltpu.VMEM((B, H), jnp.float32),   # h carry
                pltpu.VMEM((B, H), jnp.float32),   # c carry
            ],
        ),
        # direction axis is independent -> core-parallel capable; time axis is sequential
        compiler_params=pltpu.CompilerParams(
            dimension_semantics=("parallel", "arbitrary")),
    )(gx, w_hh)


def fc_head(h_f, h_b, w_stack, b):
    B = h_f.shape[0]
    C = w_stack.shape[-1]
    vmem_spec = pl.BlockSpec(memory_space=pltpu.MemorySpace.VMEM)
    return pl.pallas_call(
        _fc_kernel,
        out_shape=jax.ShapeDtypeStruct((B, C), jnp.float32),
        in_specs=[vmem_spec, vmem_spec, vmem_spec, vmem_spec],
        out_specs=vmem_spec,
    )(h_f, h_b, w_stack, b)


def rnn_model_forward(tokens, params, num_layers, t_chunk):
    T, B = tokens.shape
    # Embedding lookup (gather) is glue; kept in plain JAX.
    # TODO(synk): could be fused into layer 0 via scalar-prefetch + pl.Element row gather.
    x = params["embedding"][tokens]                       # (T, B, E)
    # self.dropout(x): identity in eval mode.

    layer_parts = x.reshape(1, T * B, x.shape[-1])        # (P=1, M, E)
    out = None
    for l in range(num_layers):
        lp = params["lstm"][l]
        H = lp["w_hh"].shape[1]
        gx = input_projection(layer_parts, lp["w_ih"], lp["bias"])   # (M, 8H)
        gx = gx.reshape(T, B, 8 * H)
        out = bilstm_recurrence(gx, lp["w_hh"], t_chunk)             # (2, T, B, H)
        # inter-layer dropout is identity in eval mode
        layer_parts = out.reshape(2, T * B, H)            # next layer's two feature planes

    h_f_last = out[0, T - 1]      # final forward hidden of last layer  (B, H)
    h_b_last = out[1, 0]          # final backward hidden of last layer (B, H)
    # self.dropout(hidden): identity in eval mode.
    logits = fc_head(h_f_last, h_b_last, params["fc_w"], params["fc_b"])   # (B, num_class)
    return logits


# ----------------------------- pure-JAX reference ---------------------------


def _lstm_dir_ref(x_seq, w_ih, w_hh, b):
    T, B, D = x_seq.shape
    H = w_hh.shape[0]

    def step(carry, x_t):
        h, c = carry
        gates = x_t @ w_ih + h @ w_hh + b
        i = jax.nn.sigmoid(gates[:, :H])
        f = jax.nn.sigmoid(gates[:, H:2 * H])
        g = jnp.tanh(gates[:, 2 * H:3 * H])
        o = jax.nn.sigmoid(gates[:, 3 * H:])
        c = f * c + i * g
        h = o * jnp.tanh(c)
        return (h, c), h

    init = (jnp.zeros((B, H), jnp.float32), jnp.zeros((B, H), jnp.float32))
    _, out = jax.lax.scan(step, init, x_seq)
    return out


def rnn_model_forward_ref(tokens, params, num_layers):
    x = params["embedding"][tokens]
    layer_in = x
    h_f_last = h_b_last = None
    for l in range(num_layers):
        lp = params["lstm"][l]
        H = lp["w_hh"].shape[1]
        w_ih_f = lp["w_ih"][..., :4 * H].reshape(-1, 4 * H)
        w_ih_b = lp["w_ih"][..., 4 * H:].reshape(-1, 4 * H)
        b_f = lp["bias"][0, :4 * H]
        b_b = lp["bias"][0, 4 * H:]
        out_f = _lstm_dir_ref(layer_in, w_ih_f, lp["w_hh"][0], b_f)
        out_b_rev = _lstm_dir_ref(jnp.flip(layer_in, 0), w_ih_b, lp["w_hh"][1], b_b)
        out_b = jnp.flip(out_b_rev, 0)
        h_f_last = out_f[-1]
        h_b_last = out_b_rev[-1]
        layer_in = jnp.concatenate([out_f, out_b], axis=-1)
    hidden_cat = jnp.concatenate([h_f_last, h_b_last], axis=-1)
    w_fc = params["fc_w"].reshape(-1, params["fc_w"].shape[-1])
    return hidden_cat @ w_fc + params["fc_b"][0]


# ----------------------------- parameter init ------------------------------


def init_params(key, vocab_size, embed_dim, hidden_size, num_layers, num_class):
    params = {}
    k_emb, k_lstm, k_fc = jax.random.split(key, 3)
    params["embedding"] = jax.random.normal(
        k_emb, (vocab_size, embed_dim), jnp.float32)

    H = hidden_size
    bound = 1.0 / jnp.sqrt(hidden_size)
    lstm = []
    keys = jax.random.split(k_lstm, num_layers * 2 * 4)
    ki = 0
    for l in range(num_layers):
        parts = 1 if l == 0 else 2           # layer 0 sees embeddings; deeper see fwd+bwd planes
        in_dim = embed_dim if l == 0 else H
        w_ih_d, w_hh_d, b_d = [], [], []
        for _ in range(2):                   # directions
            kw1, kw2, kb1, kb2 = keys[ki:ki + 4]; ki += 4
            w_ih_d.append(jax.random.uniform(kw1, (parts, in_dim, 4 * H),
                                             jnp.float32, -bound, bound))
            w_hh_d.append(jax.random.uniform(kw2, (H, 4 * H),
                                             jnp.float32, -bound, bound))
            b_ih = jax.random.uniform(kb1, (4 * H,), jnp.float32, -bound, bound)
            b_hh = jax.random.uniform(kb2, (4 * H,), jnp.float32, -bound, bound)
            b_d.append(b_ih + b_hh)
        lstm.append({
            "w_ih": jnp.concatenate(w_ih_d, axis=-1),   # (parts, in_dim, 8H) fwd|bwd on lanes
            "w_hh": jnp.stack(w_hh_d),                  # (2, H, 4H)
            "bias": jnp.concatenate(b_d)[None, :],      # (1, 8H)
        })
    params["lstm"] = lstm

    k_fcw, k_fcb = jax.random.split(k_fc)
    fc_bound = 1.0 / jnp.sqrt(2 * hidden_size)
    params["fc_w"] = jax.random.uniform(
        k_fcw, (2, hidden_size, num_class), jnp.float32, -fc_bound, fc_bound)
    params["fc_b"] = jax.random.uniform(
        k_fcb, (1, num_class), jnp.float32, -fc_bound, fc_bound)
    return params


# ----------------------------- main -----------------------------------------


if __name__ == "__main__":
    VOCAB = 100
    EMBED_DIM = 32
    HIDDEN = 32
    NUM_LAYERS = 2
    NUM_CLASS = 5
    SEQ_LEN = 8
    BATCH = 2
    T_CHUNK = SEQ_LEN     # whole sequence per grid step at this size; use 32-128 for long seqs

    key = jax.random.PRNGKey(0)
    k_params, k_tokens = jax.random.split(key)
    params = init_params(k_params, VOCAB, EMBED_DIM, HIDDEN, NUM_LAYERS, NUM_CLASS)
    tokens = jax.random.randint(k_tokens, (SEQ_LEN, BATCH), 0, VOCAB, jnp.int32)

    fwd = jax.jit(functools.partial(rnn_model_forward,
                                    num_layers=NUM_LAYERS, t_chunk=T_CHUNK))
    logits = jax.block_until_ready(fwd(tokens, params))

    ref = jax.block_until_ready(rnn_model_forward_ref(tokens, params, NUM_LAYERS))
    assert logits.shape == (BATCH, NUM_CLASS)
    assert jnp.allclose(logits, ref, atol=2e-4, rtol=2e-4), (logits, ref)

    print("KERNEL_OK")
</pallas_src>

<mosaic_0001>
module attributes {stable_mosaic.version = 11 : i64} {
  func.func @_inproj_kernel(%arg0: i32, %arg1: memref<1x16x32xf32, #tpu.memory_space<vmem>>, %arg2: memref<1x32x256xf32, #tpu.memory_space<vmem>>, %arg3: memref<1x256xf32, #tpu.memory_space<vmem>>, %arg4: memref<16x256xf32, #tpu.memory_space<vmem>>) attributes {dimension_semantics = [#tpu.dimension_semantics<parallel>], iteration_bounds = array<i64: 1>, scalar_prefetch = 0 : i64, scratch_operands = 0 : i64, tpu.core_type = #tpu.core_type<tc>, window_params = [{transform_indices = @transform_0, window_bounds = array<i64: 1, 16, 32>}, {pipeline_mode = #tpu.pipeline_mode<synchronous>, transform_indices = @transform_1, window_bounds = array<i64: 1, 32, 256>}, {pipeline_mode = #tpu.pipeline_mode<synchronous>, transform_indices = @transform_2, window_bounds = array<i64: 1, 256>}, {transform_indices = @transform_3, window_bounds = array<i64: 16, 256>}]} {
    %c0 = arith.constant 0 : index
    %c0_0 = arith.constant 0 : index
    %c0_1 = arith.constant 0 : index
    %0 = vector.load %arg1[%c0, %c0_0, %c0_1] : memref<1x16x32xf32, #tpu.memory_space<vmem>>, vector<1x16x32xf32>
    %1 = vector.shape_cast %0 : vector<1x16x32xf32> to vector<16x32xf32>
    %c0_2 = arith.constant 0 : index
    %c0_3 = arith.constant 0 : index
    %c0_4 = arith.constant 0 : index
    %2 = vector.load %arg2[%c0_2, %c0_3, %c0_4] : memref<1x32x256xf32, #tpu.memory_space<vmem>>, vector<1x32x256xf32>
    %3 = vector.shape_cast %2 : vector<1x32x256xf32> to vector<32x256xf32>
    %cst = arith.constant dense<0.000000e+00> : vector<16x256xf32>
    %4 = tpu.matmul %1, %3, %cst {dimension_numbers = #tpu.dot_dimension_numbers<[1], [0], [0], [1], [0, 0, 1, 1], [], []>} : vector<16x32xf32>, vector<32x256xf32>, vector<16x256xf32> -> vector<16x256xf32>
    %c0_5 = arith.constant 0 : index
    %c0_6 = arith.constant 0 : index
    %5 = vector.load %arg3[%c0_5, %c0_6] : memref<1x256xf32, #tpu.memory_space<vmem>>, vector<1x256xf32>
    %6 = vector.broadcast %5 : vector<1x256xf32> to vector<16x256xf32>
    %7 = arith.addf %4, %6 : vector<16x256xf32>
    %c0_7 = arith.constant 0 : index
    %c0_8 = arith.constant 0 : index
    %8 = vector.load %arg4[%c0_7, %c0_8] : memref<16x256xf32, #tpu.memory_space<vmem>>, vector<16x256xf32>
    tpu.vector_store %arg4[%c0_7, %c0_8], %7 {strides = array<i32>} : memref<16x256xf32, #tpu.memory_space<vmem>>, vector<16x256xf32>,
    return
  }
  func.func @transform_0(%arg0: i32) -> (i32, i32, i32) {
    %c0_i32 = arith.constant 0 : i32
    %c0_i32_0 = arith.constant 0 : i32
    %c0_i32_1 = arith.constant 0 : i32
    return %c0_i32, %arg0, %c0_i32_0 : i32, i32, i32
  }
  func.func @transform_1(%arg0: i32) -> (i32, i32, i32) {
    %c0_i32 = arith.constant 0 : i32
    %c0_i32_0 = arith.constant 0 : i32
    %c0_i32_1 = arith.constant 0 : i32
    %c0_i32_2 = arith.constant 0 : i32
    return %c0_i32, %c0_i32_0, %c0_i32_1 : i32, i32, i32
  }
  func.func @transform_2(%arg0: i32) -> (i32, i32) {
    %c0_i32 = arith.constant 0 : i32
    %c0_i32_0 = arith.constant 0 : i32
    %c0_i32_1 = arith.constant 0 : i32
    return %c0_i32, %c0_i32_0 : i32, i32
  }
  func.func @transform_3(%arg0: i32) -> (i32, i32) {
    %c0_i32 = arith.constant 0 : i32
    %c0_i32_0 = arith.constant 0 : i32
    return %arg0, %c0_i32 : i32, i32
  }
}

module attributes {stable_mosaic.version = 11 : i64} {
  func.func @_bilstm_kernel(%arg0: i32, %arg1: i32, %arg2: memref<8x2x128xf32, #tpu.memory_space<vmem>>, %arg3: memref<1x32x128xf32, #tpu.memory_space<vmem>>, %arg4: memref<1x8x2x32xf32, #tpu.memory_space<vmem>>, %arg5: memref<2x32xf32, #tpu.memory_space<vmem>>, %arg6: memref<2x32xf32, #tpu.memory_space<vmem>>) attributes {dimension_semantics = [#tpu.dimension_semantics<parallel>, #tpu.dimension_semantics<arbitrary>], iteration_bounds = array<i64: 2, 1>, scalar_prefetch = 0 : i64, scratch_operands = 2 : i64, tpu.core_type = #tpu.core_type<tc>, window_params = [{transform_indices = @transform_0, window_bounds = array<i64: 8, 2, 128>}, {transform_indices = @transform_1, window_bounds = array<i64: 1, 32, 128>}, {transform_indices = @transform_2, window_bounds = array<i64: 1, 8, 2, 32>}]} {
    %c0_i32 = arith.constant 0 : i32
    %0 = arith.cmpi eq, %arg1, %c0_i32 : i32
    %1 = arith.extui %0 : i1 to i32
    %c0_i32_0 = arith.constant 0 : i32
    %2 = arith.cmpi ne, %1, %c0_i32_0 : i32
    scf.if %2 {
      %cst_99 = arith.constant 0.000000e+00 : f32
      %321 = vector.broadcast %cst_99 : f32 to vector<2x32xf32>
      %c0_100 = arith.constant 0 : index
      %c0_101 = arith.constant 0 : index
      %322 = vector.load %arg5[%c0_100, %c0_101] : memref<2x32xf32, #tpu.memory_space<vmem>>, vector<2x32xf32>
      tpu.vector_store %arg5[%c0_100, %c0_101], %321 {strides = array<i32>} : memref<2x32xf32, #tpu.memory_space<vmem>>, vector<2x32xf32>,
      %cst_102 = arith.constant 0.000000e+00 : f32
      %323 = vector.broadcast %cst_102 : f32 to vector<2x32xf32>
      %c0_103 = arith.constant 0 : index
      %c0_104 = arith.constant 0 : index
      %324 = vector.load %arg6[%c0_103, %c0_104] : memref<2x32xf32, #tpu.memory_space<vmem>>, vector<2x32xf32>
      tpu.vector_store %arg6[%c0_103, %c0_104], %323 {strides = array<i32>} : memref<2x32xf32, #tpu.memory_space<vmem>>, vector<2x32xf32>,
    } else {
    }
    %c0 = arith.constant 0 : index
    %c0_1 = arith.constant 0 : index
    %c0_2 = arith.constant 0 : index
    %3 = vector.load %arg3[%c0, %c0_1, %c0_2] : memref<1x32x128xf32, #tpu.memory_space<vmem>>, vector<1x32x128xf32>
    %4 = vector.shape_cast %3 : vector<1x32x128xf32> to vector<32x128xf32>
    %c0_3 = arith.constant 0 : index
    %c0_4 = arith.constant 0 : index
    %5 = vector.load %arg5[%c0_3, %c0_4] : memref<2x32xf32, #tpu.memory_space<vmem>>, vector<2x32xf32>
    %c0_5 = arith.constant 0 : index
    %c0_6 = arith.constant 0 : index
    %6 = vector.load %arg6[%c0_5, %c0_6] : memref<2x32xf32, #tpu.memory_space<vmem>>, vector<2x32xf32>
    %c0_i32_7 = arith.constant 0 : i32
    %c1_i32 = arith.constant 1 : i32
    %7 = arith.subi %c1_i32, %arg0 : i32
    %8 = arith.muli %7, %c0_i32_7 : i32
    %c7_i32 = arith.constant 7 : i32
    %9 = arith.subi %c7_i32, %c0_i32_7 : i32
    %10 = arith.muli %arg0, %9 : i32
    %11 = arith.addi %8, %10 : i32
    %12 = arith.index_cast %11 : i32 to index
    %c0_8 = arith.constant 0 : index
    %c0_9 = arith.constant 0 : index
    %13 = vector.load %arg2[%12, %c0_8, %c0_9] : memref<8x2x128xf32, #tpu.memory_space<vmem>>, vector<1x2x128xf32>
    %14 = vector.shape_cast %13 : vector<1x2x128xf32> to vector<2x128xf32>
    %cst = arith.constant dense<0.000000e+00> : vector<2x128xf32>
    %15 = tpu.matmul %5, %4, %cst {dimension_numbers = #tpu.dot_dimension_numbers<[1], [0], [0], [1], [0, 0, 1, 1], [], []>} : vector<2x32xf32>, vector<32x128xf32>, vector<2x128xf32> -> vector<2x128xf32>
    %16 = arith.addf %14, %15 : vector<2x128xf32>
    %17 = vector.extract_strided_slice %16 {offsets = [0, 0], sizes = [2, 32], strides = [1, 1]} : vector<2x128xf32> to vector<2x32xf32>
    %18 = arith.negf %17 : vector<2x32xf32>
    %19 = math.exp %18 : vector<2x32xf32>
    %cst_10 = arith.constant 1.000000e+00 : f32
    %20 = vector.broadcast %cst_10 : f32 to vector<2x32xf32>
    %21 = arith.addf %20, %19 : vector<2x32xf32>
    %22 = arith.divf %20, %21 : vector<2x32xf32>
    %23 = vector.extract_strided_slice %16 {offsets = [0, 32], sizes = [2, 32], strides = [1, 1]} : vector<2x128xf32> to vector<2x32xf32>
    %24 = arith.negf %23 : vector<2x32xf32>
    %25 = math.exp %24 : vector<2x32xf32>
    %cst_11 = arith.constant 1.000000e+00 : f32
    %26 = vector.broadcast %cst_11 : f32 to vector<2x32xf32>
    %27 = arith.addf %26, %25 : vector<2x32xf32>
    %28 = arith.divf %26, %27 : vector<2x32xf32>
    %29 = vector.extract_strided_slice %16 {offsets = [0, 64], sizes = [2, 32], strides = [1, 1]} : vector<2x128xf32> to vector<2x32xf32>
    %30 = math.tanh %29 : vector<2x32xf32>
    %31 = vector.extract_strided_slice %16 {offsets = [0, 96], sizes = [2, 32], strides = [1, 1]} : vector<2x128xf32> to vector<2x32xf32>
    %32 = arith.negf %31 : vector<2x32xf32>
    %33 = math.exp %32 : vector<2x32xf32>
    %cst_12 = arith.constant 1.000000e+00 : f32
    %34 = vector.broadcast %cst_12 : f32 to vector<2x32xf32>
    %35 = arith.addf %34, %33 : vector<2x32xf32>
    %36 = arith.divf %34, %35 : vector<2x32xf32>
    %37 = arith.mulf %28, %6 : vector<2x32xf32>
    %38 = arith.mulf %22, %30 : vector<2x32xf32>
    %39 = arith.addf %37, %38 : vector<2x32xf32>
    %40 = math.tanh %39 : vector<2x32xf32>
    %41 = arith.mulf %36, %40 : vector<2x32xf32>
    %c0_13 = arith.constant 0 : index
    %42 = arith.index_cast %11 : i32 to index
    %c0_14 = arith.constant 0 : index
    %c0_15 = arith.constant 0 : index
    %43 = vector.load %arg4[%c0_13, %42, %c0_14, %c0_15] : memref<1x8x2x32xf32, #tpu.memory_space<vmem>>, vector<1x1x2x32xf32>
    %44 = vector.shape_cast %43 : vector<1x1x2x32xf32> to vector<2x32xf32>
    %45 = vector.shape_cast %41 : vector<2x32xf32> to vector<1x1x2x32xf32>
    tpu.vector_store %arg4[%c0_13, %42, %c0_14, %c0_15], %45 {strides = array<i32>} : memref<1x8x2x32xf32, #tpu.memory_space<vmem>>, vector<1x1x2x32xf32>,
    %c1_i32_16 = arith.constant 1 : i32
    %c1_i32_17 = arith.constant 1 : i32
    %46 = arith.subi %c1_i32_17, %arg0 : i32
    %47 = arith.muli %46, %c1_i32_16 : i32
    %c7_i32_18 = arith.constant 7 : i32
    %48 = arith.subi %c7_i32_18, %c1_i32_16 : i32
    %49 = arith.muli %arg0, %48 : i32
    %50 = arith.addi %47, %49 : i32
    %51 = arith.index_cast %50 : i32 to index
    %c0_19 = arith.constant 0 : index
    %c0_20 = arith.constant 0 : index
    %52 = vector.load %arg2[%51, %c0_19, %c0_20] : memref<8x2x128xf32, #tpu.memory_space<vmem>>, vector<1x2x128xf32>
    %53 = vector.shape_cast %52 : vector<1x2x128xf32> to vector<2x128xf32>
    %cst_21 = arith.constant dense<0.000000e+00> : vector<2x128xf32>
    %54 = tpu.matmul %41, %4, %cst_21 {dimension_numbers = #tpu.dot_dimension_numbers<[1], [0], [0], [1], [0, 0, 1, 1], [], []>} : vector<2x32xf32>, vector<32x128xf32>, vector<2x128xf32> -> vector<2x128xf32>
    %55 = arith.addf %53, %54 : vector<2x128xf32>
    %56 = vector.extract_strided_slice %55 {offsets = [0, 0], sizes = [2, 32], strides = [1, 1]} : vector<2x128xf32> to vector<2x32xf32>
    %57 = arith.negf %56 : vector<2x32xf32>
    %58 = math.exp %57 : vector<2x32xf32>
    %cst_22 = arith.constant 1.000000e+00 : f32
    %59 = vector.broadcast %cst_22 : f32 to vector<2x32xf32>
    %60 = arith.addf %59, %58 : vector<2x32xf32>
    %61 = arith.divf %59, %60 : vector<2x32xf32>
    %62 = vector.extract_strided_slice %55 {offsets = [0, 32], sizes = [2, 32], strides = [1, 1]} : vector<2x128xf32> to vector<2x32xf32>
    %63 = arith.negf %62 : vector<2x32xf32>
    %64 = math.exp %63 : vector<2x32xf32>
    %cst_23 = arith.constant 1.000000e+00 : f32
    %65 = vector.broadcast %cst_23 : f32 to vector<2x32xf32>
    %66 = arith.addf %65, %64 : vector<2x32xf32>
    %67 = arith.divf %65, %66 : vector<2x32xf32>
    %68 = vector.extract_strided_slice %55 {offsets = [0, 64], sizes = [2, 32], strides = [1, 1]} : vector<2x128xf32> to vector<2x32xf32>
    %69 = math.tanh %68 : vector<2x32xf32>
    %70 = vector.extract_strided_slice %55 {offsets = [0, 96], sizes = [2, 32], strides = [1, 1]} : vector<2x128xf32> to vector<2x32xf32>
    %71 = arith.negf %70 : vector<2x32xf32>
    %72 = math.exp %71 : vector<2x32xf32>
    %cst_24 = arith.constant 1.000000e+00 : f32
    %73 = vector.broadcast %cst_24 : f32 to vector<2x32xf32>
    %74 = arith.addf %73, %72 : vector<2x32xf32>
    %75 = arith.divf %73, %74 : vector<2x32xf32>
    %76 = arith.mulf %67, %39 : vector<2x32xf32>
    %77 = arith.mulf %61, %69 : vector<2x32xf32>
    %78 = arith.addf %76, %77 : vector<2x32xf32>
    %79 = math.tanh %78 : vector<2x32xf32>
    %80 = arith.mulf %75, %79 : vector<2x32xf32>
    %c0_25 = arith.constant 0 : index
    %81 = arith.index_cast %50 : i32 to index
    %c0_26 = arith.constant 0 : index
    %c0_27 = arith.constant 0 : index
    %82 = vector.load %arg4[%c0_25, %81, %c0_26, %c0_27] : memref<1x8x2x32xf32, #tpu.memory_space<vmem>>, vector<1x1x2x32xf32>
    %83 = vector.shape_cast %82 : vector<1x1x2x32xf32> to vector<2x32xf32>
    %84 = vector.shape_cast %80 : vector<2x32xf32> to vector<1x1x2x32xf32>
    tpu.vector_store %arg4[%c0_25, %81, %c0_26, %c0_27], %84 {strides = array<i32>} : memref<1x8x2x32xf32, #tpu.memory_space<vmem>>, vector<1x1x2x32xf32>,
    %c2_i32 = arith.constant 2 : i32
    %c1_i32_28 = arith.constant 1 : i32
    %85 = arith.subi %c1_i32_28, %arg0 : i32
    %86 = arith.muli %85, %c2_i32 : i32
    %c7_i32_29 = arith.constant 7 : i32
    %87 = arith.subi %c7_i32_29, %c2_i32 : i32
    %88 = arith.muli %arg0, %87 : i32
    %89 = arith.addi %86, %88 : i32
    %90 = arith.index_cast %89 : i32 to index
    %c0_30 = arith.constant 0 : index
    %c0_31 = arith.constant 0 : index
    %91 = vector.load %arg2[%90, %c0_30, %c0_31] : memref<8x2x128xf32, #tpu.memory_space<vmem>>, vector<1x2x128xf32>
    %92 = vector.shape_cast %91 : vector<1x2x128xf32> to vector<2x128xf32>
    %cst_32 = arith.constant dense<0.000000e+00> : vector<2x128xf32>
    %93 = tpu.matmul %80, %4, %cst_32 {dimension_numbers = #tpu.dot_dimension_numbers<[1], [0], [0], [1], [0, 0, 1, 1], [], []>} : vector<2x32xf32>, vector<32x128xf32>, vector<2x128xf32> -> vector<2x128xf32>
    %94 = arith.addf %92, %93 : vector<2x128xf32>
    %95 = vector.extract_strided_slice %94 {offsets = [0, 0], sizes = [2, 32], strides = [1, 1]} : vector<2x128xf32> to vector<2x32xf32>
    %96 = arith.negf %95 : vector<2x32xf32>
    %97 = math.exp %96 : vector<2x32xf32>
    %cst_33 = arith.constant 1.000000e+00 : f32
    %98 = vector.broadcast %cst_33 : f32 to vector<2x32xf32>
    %99 = arith.addf %98, %97 : vector<2x32xf32>
    %100 = arith.divf %98, %99 : vector<2x32xf32>
    %101 = vector.extract_strided_slice %94 {offsets = [0, 32], sizes = [2, 32], strides = [1, 1]} : vector<2x128xf32> to vector<2x32xf32>
    %102 = arith.negf %101 : vector<2x32xf32>
    %103 = math.exp %102 : vector<2x32xf32>
    %cst_34 = arith.constant 1.000000e+00 : f32
    %104 = vector.broadcast %cst_34 : f32 to vector<2x32xf32>
    %105 = arith.addf %104, %103 : vector<2x32xf32>
    %106 = arith.divf %104, %105 : vector<2x32xf32>
    %107 = vector.extract_strided_slice %94 {offsets = [0, 64], sizes = [2, 32], strides = [1, 1]} : vector<2x128xf32> to vector<2x32xf32>
    %108 = math.tanh %107 : vector<2x32xf32>
    %109 = vector.extract_strided_slice %94 {offsets = [0, 96], sizes = [2, 32], strides = [1, 1]} : vector<2x128xf32> to vector<2x32xf32>
    %110 = arith.negf %109 : vector<2x32xf32>
    %111 = math.exp %110 : vector<2x32xf32>
    %cst_35 = arith.constant 1.000000e+00 : f32
    %112 = vector.broadcast %cst_35 : f32 to vector<2x32xf32>
    %113 = arith.addf %112, %111 : vector<2x32xf32>
    %114 = arith.divf %112, %113 : vector<2x32xf32>
    %115 = arith.mulf %106, %78 : vector<2x32xf32>
    %116 = arith.mulf %100, %108 : vector<2x32xf32>
    %117 = arith.addf %115, %116 : vector<2x32xf32>
    %118 = math.tanh %117 : vector<2x32xf32>
    %119 = arith.mulf %114, %118 : vector<2x32xf32>
    %c0_36 = arith.constant 0 : index
    %120 = arith.index_cast %89 : i32 to index
    %c0_37 = arith.constant 0 : index
    %c0_38 = arith.constant 0 : index
    %121 = vector.load %arg4[%c0_36, %120, %c0_37, %c0_38] : memref<1x8x2x32xf32, #tpu.memory_space<vmem>>, vector<1x1x2x32xf32>
    %122 = vector.shape_cast %121 : vector<1x1x2x32xf32> to vector<2x32xf32>
    %123 = vector.shape_cast %119 : vector<2x32xf32> to vector<1x1x2x32xf32>
    tpu.vector_store %arg4[%c0_36, %120, %c0_37, %c0_38], %123 {strides = array<i32>} : memref<1x8x2x32xf32, #tpu.memory_space<vmem>>, vector<1x1x2x32xf32>,
    %c3_i32 = arith.constant 3 : i32
    %c1_i32_39 = arith.constant 1 : i32
    %124 = arith.subi %c1_i32_39, %arg0 : i32
    %125 = arith.muli %124, %c3_i32 : i32
    %c7_i32_40 = arith.constant 7 : i32
    %126 = arith.subi %c7_i32_40, %c3_i32 : i32
    %127 = arith.muli %arg0, %126 : i32
    %128 = arith.addi %125, %127 : i32
    %129 = arith.index_cast %128 : i32 to index
    %c0_41 = arith.constant 0 : index
    %c0_42 = arith.constant 0 : index
    %130 = vector.load %arg2[%129, %c0_41, %c0_42] : memref<8x2x128xf32, #tpu.memory_space<vmem>>, vector<1x2x128xf32>
    %131 = vector.shape_cast %130 : vector<1x2x128xf32> to vector<2x128xf32>
    %cst_43 = arith.constant dense<0.000000e+00> : vector<2x128xf32>
    %132 = tpu.matmul %119, %4, %cst_43 {dimension_numbers = #tpu.dot_dimension_numbers<[1], [0], [0], [1], [0, 0, 1, 1], [], []>} : vector<2x32xf32>, vector<32x128xf32>, vector<2x128xf32> -> vector<2x128xf32>
    %133 = arith.addf %131, %132 : vector<2x128xf32>
    %134 = vector.extract_strided_slice %133 {offsets = [0, 0], sizes = [2, 32], strides = [1, 1]} : vector<2x128xf32> to vector<2x32xf32>
    %135 = arith.negf %134 : vector<2x32xf32>
    %136 = math.exp %135 : vector<2x32xf32>
    %cst_44 = arith.constant 1.000000e+00 : f32
    %137 = vector.broadcast %cst_44 : f32 to vector<2x32xf32>
    %138 = arith.addf %137, %136 : vector<2x32xf32>
    %139 = arith.divf %137, %138 : vector<2x32xf32>
    %140 = vector.extract_strided_slice %133 {offsets = [0, 32], sizes = [2, 32], strides = [1, 1]} : vector<2x128xf32> to vector<2x32xf32>
    %141 = arith.negf %140 : vector<2x32xf32>
    %142 = math.exp %141 : vector<2x32xf32>
    %cst_45 = arith.constant 1.000000e+00 : f32
    %143 = vector.broadcast %cst_45 : f32 to vector<2x32xf32>
    %144 = arith.addf %143, %142 : vector<2x32xf32>
    %145 = arith.divf %143, %144 : vector<2x32xf32>
    %146 = vector.extract_strided_slice %133 {offsets = [0, 64], sizes = [2, 32], strides = [1, 1]} : vector<2x128xf32> to vector<2x32xf32>
    %147 = math.tanh %146 : vector<2x32xf32>
    %148 = vector.extract_strided_slice %133 {offsets = [0, 96], sizes = [2, 32], strides = [1, 1]} : vector<2x128xf32> to vector<2x32xf32>
    %149 = arith.negf %148 : vector<2x32xf32>
    %150 = math.exp %149 : vector<2x32xf32>
    %cst_46 = arith.constant 1.000000e+00 : f32
    %151 = vector.broadcast %cst_46 : f32 to vector<2x32xf32>
    %152 = arith.addf %151, %150 : vector<2x32xf32>
    %153 = arith.divf %151, %152 : vector<2x32xf32>
    %154 = arith.mulf %145, %117 : vector<2x32xf32>
    %155 = arith.mulf %139, %147 : vector<2x32xf32>
    %156 = arith.addf %154, %155 : vector<2x32xf32>
    %157 = math.tanh %156 : vector<2x32xf32>
    %158 = arith.mulf %153, %157 : vector<2x32xf32>
    %c0_47 = arith.constant 0 : index
    %159 = arith.index_cast %128 : i32 to index
    %c0_48 = arith.constant 0 : index
    %c0_49 = arith.constant 0 : index
    %160 = vector.load %arg4[%c0_47, %159, %c0_48, %c0_49] : memref<1x8x2x32xf32, #tpu.memory_space<vmem>>, vector<1x1x2x32xf32>
    %161 = vector.shape_cast %160 : vector<1x1x2x32xf32> to vector<2x32xf32>
    %162 = vector.shape_cast %158 : vector<2x32xf32> to vector<1x1x2x32xf32>
    tpu.vector_store %arg4[%c0_47, %159, %c0_48, %c0_49], %162 {strides = array<i32>} : memref<1x8x2x32xf32, #tpu.memory_space<vmem>>, vector<1x1x2x32xf32>,
    %c4_i32 = arith.constant 4 : i32
    %c1_i32_50 = arith.constant 1 : i32
    %163 = arith.subi %c1_i32_50, %arg0 : i32
    %164 = arith.muli %163, %c4_i32 : i32
    %c7_i32_51 = arith.constant 7 : i32
    %165 = arith.subi %c7_i32_51, %c4_i32 : i32
    %166 = arith.muli %arg0, %165 : i32
    %167 = arith.addi %164, %166 : i32
    %168 = arith.index_cast %167 : i32 to index
    %c0_52 = arith.constant 0 : index
    %c0_53 = arith.constant 0 : index
    %169 = vector.load %arg2[%168, %c0_52, %c0_53] : memref<8x2x128xf32, #tpu.memory_space<vmem>>, vector<1x2x128xf32>
    %170 = vector.shape_cast %169 : vector<1x2x128xf32> to vector<2x128xf32>
    %cst_54 = arith.constant dense<0.000000e+00> : vector<2x128xf32>
    %171 = tpu.matmul %158, %4, %cst_54 {dimension_numbers = #tpu.dot_dimension_numbers<[1], [0], [0], [1], [0, 0, 1, 1], [], []>} : vector<2x32xf32>, vector<32x128xf32>, vector<2x128xf32> -> vector<2x128xf32>
    %172 = arith.addf %170, %171 : vector<2x128xf32>
    %173 = vector.extract_strided_slice %172 {offsets = [0, 0], sizes = [2, 32], strides = [1, 1]} : vector<2x128xf32> to vector<2x32xf32>
    %174 = arith.negf %173 : vector<2x32xf32>
    %175 = math.exp %174 : vector<2x32xf32>
    %cst_55 = arith.constant 1.000000e+00 : f32
    %176 = vector.broadcast %cst_55 : f32 to vector<2x32xf32>
    %177 = arith.addf %176, %175 : vector<2x32xf32>
    %178 = arith.divf %176, %177 : vector<2x32xf32>
    %179 = vector.extract_strided_slice %172 {offsets = [0, 32], sizes = [2, 32], strides = [1, 1]} : vector<2x128xf32> to vector<2x32xf32>
    %180 = arith.negf %179 : vector<2x32xf32>
    %181 = math.exp %180 : vector<2x32xf32>
    %cst_56 = arith.constant 1.000000e+00 : f32
    %182 = vector.broadcast %cst_56 : f32 to vector<2x32xf32>
    %183 = arith.addf %182, %181 : vector<2x32xf32>
    %184 = arith.divf %182, %183 : vector<2x32xf32>
    %185 = vector.extract_strided_slice %172 {offsets = [0, 64], sizes = [2, 32], strides = [1, 1]} : vector<2x128xf32> to vector<2x32xf32>
    %186 = math.tanh %185 : vector<2x32xf32>
    %187 = vector.extract_strided_slice %172 {offsets = [0, 96], sizes = [2, 32], strides = [1, 1]} : vector<2x128xf32> to vector<2x32xf32>
    %188 = arith.negf %187 : vector<2x32xf32>
    %189 = math.exp %188 : vector<2x32xf32>
    %cst_57 = arith.constant 1.000000e+00 : f32
    %190 = vector.broadcast %cst_57 : f32 to vector<2x32xf32>
    %191 = arith.addf %190, %189 : vector<2x32xf32>
    %192 = arith.divf %190, %191 : vector<2x32xf32>
    %193 = arith.mulf %184, %156 : vector<2x32xf32>
    %194 = arith.mulf %178, %186 : vector<2x32xf32>
    %195 = arith.addf %193, %194 : vector<2x32xf32>
    %196 = math.tanh %195 : vector<2x32xf32>
    %197 = arith.mulf %192, %196 : vector<2x32xf32>
    %c0_58 = arith.constant 0 : index
    %198 = arith.index_cast %167 : i32 to index
    %c0_59 = arith.constant 0 : index
    %c0_60 = arith.constant 0 : index
    %199 = vector.load %arg4[%c0_58, %198, %c0_59, %c0_60] : memref<1x8x2x32xf32, #tpu.memory_space<vmem>>, vector<1x1x2x32xf32>
    %200 = vector.shape_cast %199 : vector<1x1x2x32xf32> to vector<2x32xf32>
    %201 = vector.shape_cast %197 : vector<2x32xf32> to vector<1x1x2x32xf32>
    tpu.vector_store %arg4[%c0_58, %198, %c0_59, %c0_60], %201 {strides = array<i32>} : memref<1x8x2x32xf32, #tpu.memory_space<vmem>>, vector<1x1x2x32xf32>,
    %c5_i32 = arith.constant 5 : i32
    %c1_i32_61 = arith.constant 1 : i32
    %202 = arith.subi %c1_i32_61, %arg0 : i32
    %203 = arith.muli %202, %c5_i32 : i32
    %c7_i32_62 = arith.constant 7 : i32
    %204 = arith.subi %c7_i32_62, %c5_i32 : i32
    %205 = arith.muli %arg0, %204 : i32
    %206 = arith.addi %203, %205 : i32
    %207 = arith.index_cast %206 : i32 to index
    %c0_63 = arith.constant 0 : index
    %c0_64 = arith.constant 0 : index
    %208 = vector.load %arg2[%207, %c0_63, %c0_64] : memref<8x2x128xf32, #tpu.memory_space<vmem>>, vector<1x2x128xf32>
    %209 = vector.shape_cast %208 : vector<1x2x128xf32> to vector<2x128xf32>
    %cst_65 = arith.constant dense<0.000000e+00> : vector<2x128xf32>
    %210 = tpu.matmul %197, %4, %cst_65 {dimension_numbers = #tpu.dot_dimension_numbers<[1], [0], [0], [1], [0, 0, 1, 1], [], []>} : vector<2x32xf32>, vector<32x128xf32>, vector<2x128xf32> -> vector<2x128xf32>
    %211 = arith.addf %209, %210 : vector<2x128xf32>
    %212 = vector.extract_strided_slice %211 {offsets = [0, 0], sizes = [2, 32], strides = [1, 1]} : vector<2x128xf32> to vector<2x32xf32>
    %213 = arith.negf %212 : vector<2x32xf32>
    %214 = math.exp %213 : vector<2x32xf32>
    %cst_66 = arith.constant 1.000000e+00 : f32
    %215 = vector.broadcast %cst_66 : f32 to vector<2x32xf32>
    %216 = arith.addf %215, %214 : vector<2x32xf32>
    %217 = arith.divf %215, %216 : vector<2x32xf32>
    %218 = vector.extract_strided_slice %211 {offsets = [0, 32], sizes = [2, 32], strides = [1, 1]} : vector<2x128xf32> to vector<2x32xf32>
    %219 = arith.negf %218 : vector<2x32xf32>
    %220 = math.exp %219 : vector<2x32xf32>
    %cst_67 = arith.constant 1.000000e+00 : f32
    %221 = vector.broadcast %cst_67 : f32 to vector<2x32xf32>
    %222 = arith.addf %221, %220 : vector<2x32xf32>
    %223 = arith.divf %221, %222 : vector<2x32xf32>
    %224 = vector.extract_strided_slice %211 {offsets = [0, 64], sizes = [2, 32], strides = [1, 1]} : vector<2x128xf32> to vector<2x32xf32>
    %225 = math.tanh %224 : vector<2x32xf32>
    %226 = vector.extract_strided_slice %211 {offsets = [0, 96], sizes = [2, 32], strides = [1, 1]} : vector<2x128xf32> to vector<2x32xf32>
    %227 = arith.negf %226 : vector<2x32xf32>
    %228 = math.exp %227 : vector<2x32xf32>
    %cst_68 = arith.constant 1.000000e+00 : f32
    %229 = vector.broadcast %cst_68 : f32 to vector<2x32xf32>
    %230 = arith.addf %229, %228 : vector<2x32xf32>
    %231 = arith.divf %229, %230 : vector<2x32xf32>
    %232 = arith.mulf %223, %195 : vector<2x32xf32>
    %233 = arith.mulf %217, %225 : vector<2x32xf32>
    %234 = arith.addf %232, %233 : vector<2x32xf32>
    %235 = math.tanh %234 : vector<2x32xf32>
    %236 = arith.mulf %231, %235 : vector<2x32xf32>
    %c0_69 = arith.constant 0 : index
    %237 = arith.index_cast %206 : i32 to index
    %c0_70 = arith.constant 0 : index
    %c0_71 = arith.constant 0 : index
    %238 = vector.load %arg4[%c0_69, %237, %c0_70, %c0_71] : memref<1x8x2x32xf32, #tpu.memory_space<vmem>>, vector<1x1x2x32xf32>
    %239 = vector.shape_cast %238 : vector<1x1x2x32xf32> to vector<2x32xf32>
    %240 = vector.shape_cast %236 : vector<2x32xf32> to vector<1x1x2x32xf32>
    tpu.vector_store %arg4[%c0_69, %237, %c0_70, %c0_71], %240 {strides = array<i32>} : memref<1x8x2x32xf32, #tpu.memory_space<vmem>>, vector<1x1x2x32xf32>,
    %c6_i32 = arith.constant 6 : i32
    %c1_i32_72 = arith.constant 1 : i32
    %241 = arith.subi %c1_i32_72, %arg0 : i32
    %242 = arith.muli %241, %c6_i32 : i32
    %c7_i32_73 = arith.constant 7 : i32
    %243 = arith.subi %c7_i32_73, %c6_i32 : i32
    %244 = arith.muli %arg0, %243 : i32
    %245 = arith.addi %242, %244 : i32
    %246 = arith.index_cast %245 : i32 to index
    %c0_74 = arith.constant 0 : index
    %c0_75 = arith.constant 0 : index
    %247 = vector.load %arg2[%246, %c0_74, %c0_75] : memref<8x2x128xf32, #tpu.memory_space<vmem>>, vector<1x2x128xf32>
    %248 = vector.shape_cast %247 : vector<1x2x128xf32> to vector<2x128xf32>
    %cst_76 = arith.constant dense<0.000000e+00> : vector<2x128xf32>
    %249 = tpu.matmul %236, %4, %cst_76 {dimension_numbers = #tpu.dot_dimension_numbers<[1], [0], [0], [1], [0, 0, 1, 1], [], []>} : vector<2x32xf32>, vector<32x128xf32>, vector<2x128xf32> -> vector<2x128xf32>
    %250 = arith.addf %248, %249 : vector<2x128xf32>
    %251 = vector.extract_strided_slice %250 {offsets = [0, 0], sizes = [2, 32], strides = [1, 1]} : vector<2x128xf32> to vector<2x32xf32>
    %252 = arith.negf %251 : vector<2x32xf32>
    %253 = math.exp %252 : vector<2x32xf32>
    %cst_77 = arith.constant 1.000000e+00 : f32
    %254 = vector.broadcast %cst_77 : f32 to vector<2x32xf32>
    %255 = arith.addf %254, %253 : vector<2x32xf32>
    %256 = arith.divf %254, %255 : vector<2x32xf32>
    %257 = vector.extract_strided_slice %250 {offsets = [0, 32], sizes = [2, 32], strides = [1, 1]} : vector<2x128xf32> to vector<2x32xf32>
    %258 = arith.negf %257 : vector<2x32xf32>
    %259 = math.exp %258 : vector<2x32xf32>
    %cst_78 = arith.constant 1.000000e+00 : f32
    %260 = vector.broadcast %cst_78 : f32 to vector<2x32xf32>
    %261 = arith.addf %260, %259 : vector<2x32xf32>
    %262 = arith.divf %260, %261 : vector<2x32xf32>
    %263 = vector.extract_strided_slice %250 {offsets = [0, 64], sizes = [2, 32], strides = [1, 1]} : vector<2x128xf32> to vector<2x32xf32>
    %264 = math.tanh %263 : vector<2x32xf32>
    %265 = vector.extract_strided_slice %250 {offsets = [0, 96], sizes = [2, 32], strides = [1, 1]} : vector<2x128xf32> to vector<2x32xf32>
    %266 = arith.negf %265 : vector<2x32xf32>
    %267 = math.exp %266 : vector<2x32xf32>
    %cst_79 = arith.constant 1.000000e+00 : f32
    %268 = vector.broadcast %cst_79 : f32 to vector<2x32xf32>
    %269 = arith.addf %268, %267 : vector<2x32xf32>
    %270 = arith.divf %268, %269 : vector<2x32xf32>
    %271 = arith.mulf %262, %234 : vector<2x32xf32>
    %272 = arith.mulf %256, %264 : vector<2x32xf32>
    %273 = arith.addf %271, %272 : vector<2x32xf32>
    %274 = math.tanh %273 : vector<2x32xf32>
    %275 = arith.mulf %270, %274 : vector<2x32xf32>
    %c0_80 = arith.constant 0 : index
    %276 = arith.index_cast %245 : i32 to index
    %c0_81 = arith.constant 0 : index
    %c0_82 = arith.constant 0 : index
    %277 = vector.load %arg4[%c0_80, %276, %c0_81, %c0_82] : memref<1x8x2x32xf32, #tpu.memory_space<vmem>>, vector<1x1x2x32xf32>
    %278 = vector.shape_cast %277 : vector<1x1x2x32xf32> to vector<2x32xf32>
    %279 = vector.shape_cast %275 : vector<2x32xf32> to vector<1x1x2x32xf32>
    tpu.vector_store %arg4[%c0_80, %276, %c0_81, %c0_82], %279 {strides = array<i32>} : memref<1x8x2x32xf32, #tpu.memory_space<vmem>>, vector<1x1x2x32xf32>,
    %c7_i32_83 = arith.constant 7 : i32
    %c1_i32_84 = arith.constant 1 : i32
    %280 = arith.subi %c1_i32_84, %arg0 : i32
    %281 = arith.muli %280, %c7_i32_83 : i32
    %c7_i32_85 = arith.constant 7 : i32
    %282 = arith.subi %c7_i32_85, %c7_i32_83 : i32
    %283 = arith.muli %arg0, %282 : i32
    %284 = arith.addi %281, %283 : i32
    %285 = arith.index_cast %284 : i32 to index
    %c0_86 = arith.constant 0 : index
    %c0_87 = arith.constant 0 : index
    %286 = vector.load %arg2[%285, %c0_86, %c0_87] : memref<8x2x128xf32, #tpu.memory_space<vmem>>, vector<1x2x128xf32>
    %287 = vector.shape_cast %286 : vector<1x2x128xf32> to vector<2x128xf32>
    %cst_88 = arith.constant dense<0.000000e+00> : vector<2x128xf32>
    %288 = tpu.matmul %275, %4, %cst_88 {dimension_numbers = #tpu.dot_dimension_numbers<[1], [0], [0], [1], [0, 0, 1, 1], [], []>} : vector<2x32xf32>, vector<32x128xf32>, vector<2x128xf32> -> vector<2x128xf32>
    %289 = arith.addf %287, %288 : vector<2x128xf32>
    %290 = vector.extract_strided_slice %289 {offsets = [0, 0], sizes = [2, 32], strides = [1, 1]} : vector<2x128xf32> to vector<2x32xf32>
    %291 = arith.negf %290 : vector<2x32xf32>
    %292 = math.exp %291 : vector<2x32xf32>
    %cst_89 = arith.constant 1.000000e+00 : f32
    %293 = vector.broadcast %cst_89 : f32 to vector<2x32xf32>
    %294 = arith.addf %293, %292 : vector<2x32xf32>
    %295 = arith.divf %293, %294 : vector<2x32xf32>
    %296 = vector.extract_strided_slice %289 {offsets = [0, 32], sizes = [2, 32], strides = [1, 1]} : vector<2x128xf32> to vector<2x32xf32>
    %297 = arith.negf %296 : vector<2x32xf32>
    %298 = math.exp %297 : vector<2x32xf32>
    %cst_90 = arith.constant 1.000000e+00 : f32
    %299 = vector.broadcast %cst_90 : f32 to vector<2x32xf32>
    %300 = arith.addf %299, %298 : vector<2x32xf32>
    %301 = arith.divf %299, %300 : vector<2x32xf32>
    %302 = vector.extract_strided_slice %289 {offsets = [0, 64], sizes = [2, 32], strides = [1, 1]} : vector<2x128xf32> to vector<2x32xf32>
    %303 = math.tanh %302 : vector<2x32xf32>
    %304 = vector.extract_strided_slice %289 {offsets = [0, 96], sizes = [2, 32], strides = [1, 1]} : vector<2x128xf32> to vector<2x32xf32>
    %305 = arith.negf %304 : vector<2x32xf32>
    %306 = math.exp %305 : vector<2x32xf32>
    %cst_91 = arith.constant 1.000000e+00 : f32
    %307 = vector.broadcast %cst_91 : f32 to vector<2x32xf32>
    %308 = arith.addf %307, %306 : vector<2x32xf32>
    %309 = arith.divf %307, %308 : vector<2x32xf32>
    %310 = arith.mulf %301, %273 : vector<2x32xf32>
    %311 = arith.mulf %295, %303 : vector<2x32xf32>
    %312 = arith.addf %310, %311 : vector<2x32xf32>
    %313 = math.tanh %312 : vector<2x32xf32>
    %314 = arith.mulf %309, %313 : vector<2x32xf32>
    %c0_92 = arith.constant 0 : index
    %315 = arith.index_cast %284 : i32 to index
    %c0_93 = arith.constant 0 : index
    %c0_94 = arith.constant 0 : index
    %316 = vector.load %arg4[%c0_92, %315, %c0_93, %c0_94] : memref<1x8x2x32xf32, #tpu.memory_space<vmem>>, vector<1x1x2x32xf32>
    %317 = vector.shape_cast %316 : vector<1x1x2x32xf32> to vector<2x32xf32>
    %318 = vector.shape_cast %314 : vector<2x32xf32> to vector<1x1x2x32xf32>
    tpu.vector_store %arg4[%c0_92, %315, %c0_93, %c0_94], %318 {strides = array<i32>} : memref<1x8x2x32xf32, #tpu.memory_space<vmem>>, vector<1x1x2x32xf32>,
    %c8_i32 = arith.constant 8 : i32
    %c0_95 = arith.constant 0 : index
    %c0_96 = arith.constant 0 : index
    %319 = vector.load %arg5[%c0_95, %c0_96] : memref<2x32xf32, #tpu.memory_space<vmem>>, vector<2x32xf32>
    tpu.vector_store %arg5[%c0_95, %c0_96], %314 {strides = array<i32>} : memref<2x32xf32, #tpu.memory_space<vmem>>, vector<2x32xf32>,
    %c0_97 = arith.constant 0 : index
    %c0_98 = arith.constant 0 : index
    %320 = vector.load %arg6[%c0_97, %c0_98] : memref<2x32xf32, #tpu.memory_space<vmem>>, vector<2x32xf32>
    tpu.vector_store %arg6[%c0_97, %c0_98], %312 {strides = array<i32>} : memref<2x32xf32, #tpu.memory_space<vmem>>, vector<2x32xf32>,
    return
  }
  func.func @transform_0(%arg0: i32, %arg1: i32) -> (i32, i32, i32) {
    %c1_i32 = arith.constant 1 : i32
    %0 = arith.subi %c1_i32, %arg0 : i32
    %1 = arith.muli %0, %arg1 : i32
    %c0_i32 = arith.constant 0 : i32
    %2 = arith.subi %c0_i32, %arg1 : i32
    %3 = arith.muli %arg0, %2 : i32
    %4 = arith.addi %1, %3 : i32
    %c0_i32_0 = arith.constant 0 : i32
    %c0_i32_1 = arith.constant 0 : i32
    return %4, %c0_i32_0, %arg0 : i32, i32, i32
  }
  func.func @transform_1(%arg0: i32, %arg1: i32) -> (i32, i32, i32) {
    %c0_i32 = arith.constant 0 : i32
    %c0_i32_0 = arith.constant 0 : i32
    %c0_i32_1 = arith.constant 0 : i32
    return %arg0, %c0_i32, %c0_i32_0 : i32, i32, i32
  }
  func.func @transform_2(%arg0: i32, %arg1: i32) -> (i32, i32, i32, i32) {
    %c1_i32 = arith.constant 1 : i32
    %0 = arith.subi %c1_i32, %arg0 : i32
    %1 = arith.muli %0, %arg1 : i32
    %c0_i32 = arith.constant 0 : i32
    %2 = arith.subi %c0_i32, %arg1 : i32
    %3 = arith.muli %arg0, %2 : i32
    %4 = arith.addi %1, %3 : i32
    %c0_i32_0 = arith.constant 0 : i32
    %c0_i32_1 = arith.constant 0 : i32
    %c0_i32_2 = arith.constant 0 : i32
    return %arg0, %4, %c0_i32_0, %c0_i32_1 : i32, i32, i32, i32
  }
}

module attributes {stable_mosaic.version = 11 : i64} {
  func.func @_inproj_kernel(%arg0: i32, %arg1: memref<2x16x32xf32, #tpu.memory_space<vmem>>, %arg2: memref<2x32x256xf32, #tpu.memory_space<vmem>>, %arg3: memref<1x256xf32, #tpu.memory_space<vmem>>, %arg4: memref<16x256xf32, #tpu.memory_space<vmem>>) attributes {dimension_semantics = [#tpu.dimension_semantics<parallel>], iteration_bounds = array<i64: 1>, scalar_prefetch = 0 : i64, scratch_operands = 0 : i64, tpu.core_type = #tpu.core_type<tc>, window_params = [{transform_indices = @transform_0, window_bounds = array<i64: 2, 16, 32>}, {pipeline_mode = #tpu.pipeline_mode<synchronous>, transform_indices = @transform_1, window_bounds = array<i64: 2, 32, 256>}, {pipeline_mode = #tpu.pipeline_mode<synchronous>, transform_indices = @transform_2, window_bounds = array<i64: 1, 256>}, {transform_indices = @transform_3, window_bounds = array<i64: 16, 256>}]} {
    %c0 = arith.constant 0 : index
    %c0_0 = arith.constant 0 : index
    %c0_1 = arith.constant 0 : index
    %0 = vector.load %arg1[%c0, %c0_0, %c0_1] : memref<2x16x32xf32, #tpu.memory_space<vmem>>, vector<1x16x32xf32>
    %1 = vector.shape_cast %0 : vector<1x16x32xf32> to vector<16x32xf32>
    %c0_2 = arith.constant 0 : index
    %c0_3 = arith.constant 0 : index
    %c0_4 = arith.constant 0 : index
    %2 = vector.load %arg2[%c0_2, %c0_3, %c0_4] : memref<2x32x256xf32, #tpu.memory_space<vmem>>, vector<1x32x256xf32>
    %3 = vector.shape_cast %2 : vector<1x32x256xf32> to vector<32x256xf32>
    %cst = arith.constant dense<0.000000e+00> : vector<16x256xf32>
    %4 = tpu.matmul %1, %3, %cst {dimension_numbers = #tpu.dot_dimension_numbers<[1], [0], [0], [1], [0, 0, 1, 1], [], []>} : vector<16x32xf32>, vector<32x256xf32>, vector<16x256xf32> -> vector<16x256xf32>
    %c1 = arith.constant 1 : index
    %c0_5 = arith.constant 0 : index
    %c0_6 = arith.constant 0 : index
    %5 = vector.load %arg1[%c1, %c0_5, %c0_6] : memref<2x16x32xf32, #tpu.memory_space<vmem>>, vector<1x16x32xf32>
    %6 = vector.shape_cast %5 : vector<1x16x32xf32> to vector<16x32xf32>
    %c1_7 = arith.constant 1 : index
    %c0_8 = arith.constant 0 : index
    %c0_9 = arith.constant 0 : index
    %7 = vector.load %arg2[%c1_7, %c0_8, %c0_9] : memref<2x32x256xf32, #tpu.memory_space<vmem>>, vector<1x32x256xf32>
    %8 = vector.shape_cast %7 : vector<1x32x256xf32> to vector<32x256xf32>
    %cst_10 = arith.constant dense<0.000000e+00> : vector<16x256xf32>
    %9 = tpu.matmul %6, %8, %cst_10 {dimension_numbers = #tpu.dot_dimension_numbers<[1], [0], [0], [1], [0, 0, 1, 1], [], []>} : vector<16x32xf32>, vector<32x256xf32>, vector<16x256xf32> -> vector<16x256xf32>
    %10 = arith.addf %4, %9 : vector<16x256xf32>
    %c0_11 = arith.constant 0 : index
    %c0_12 = arith.constant 0 : index
    %11 = vector.load %arg3[%c0_11, %c0_12] : memref<1x256xf32, #tpu.memory_space<vmem>>, vector<1x256xf32>
    %12 = vector.broadcast %11 : vector<1x256xf32> to vector<16x256xf32>
    %13 = arith.addf %10, %12 : vector<16x256xf32>
    %c0_13 = arith.constant 0 : index
    %c0_14 = arith.constant 0 : index
    %14 = vector.load %arg4[%c0_13, %c0_14] : memref<16x256xf32, #tpu.memory_space<vmem>>, vector<16x256xf32>
    tpu.vector_store %arg4[%c0_13, %c0_14], %13 {strides = array<i32>} : memref<16x256xf32, #tpu.memory_space<vmem>>, vector<16x256xf32>,
    return
  }
  func.func @transform_0(%arg0: i32) -> (i32, i32, i32) {
    %c0_i32 = arith.constant 0 : i32
    %c0_i32_0 = arith.constant 0 : i32
    %c0_i32_1 = arith.constant 0 : i32
    return %c0_i32, %arg0, %c0_i32_0 : i32, i32, i32
  }
  func.func @transform_1(%arg0: i32) -> (i32, i32, i32) {
    %c0_i32 = arith.constant 0 : i32
    %c0_i32_0 = arith.constant 0 : i32
    %c0_i32_1 = arith.constant 0 : i32
    %c0_i32_2 = arith.constant 0 : i32
    return %c0_i32, %c0_i32_0, %c0_i32_1 : i32, i32, i32
  }
  func.func @transform_2(%arg0: i32) -> (i32, i32) {
    %c0_i32 = arith.constant 0 : i32
    %c0_i32_0 = arith.constant 0 : i32
    %c0_i32_1 = arith.constant 0 : i32
    return %c0_i32, %c0_i32_0 : i32, i32
  }
  func.func @transform_3(%arg0: i32) -> (i32, i32) {
    %c0_i32 = arith.constant 0 : i32
    %c0_i32_0 = arith.constant 0 : i32
    return %arg0, %c0_i32 : i32, i32
  }
}

module attributes {stable_mosaic.version = 11 : i64} {
  func.func @_fc_kernel(%arg0: memref<2x32xf32, #tpu.memory_space<vmem>>, %arg1: memref<2x32xf32, #tpu.memory_space<vmem>>, %arg2: memref<2x32x5xf32, #tpu.memory_space<vmem>>, %arg3: memref<1x5xf32, #tpu.memory_space<vmem>>, %arg4: memref<2x5xf32, #tpu.memory_space<vmem>>) attributes {dimension_semantics = [], scalar_prefetch = 0 : i64, scratch_operands = 0 : i64, tpu.core_type = #tpu.core_type<tc>} {
    %c0 = arith.constant 0 : index
    %c0_0 = arith.constant 0 : index
    %0 = vector.load %arg0[%c0, %c0_0] : memref<2x32xf32, #tpu.memory_space<vmem>>, vector<2x32xf32>
    %c0_1 = arith.constant 0 : index
    %c0_2 = arith.constant 0 : index
    %c0_3 = arith.constant 0 : index
    %1 = vector.load %arg2[%c0_1, %c0_2, %c0_3] : memref<2x32x5xf32, #tpu.memory_space<vmem>>, vector<1x32x5xf32>
    %2 = vector.shape_cast %1 : vector<1x32x5xf32> to vector<32x5xf32>
    %cst = arith.constant dense<0.000000e+00> : vector<2x5xf32>
    %3 = tpu.matmul %0, %2, %cst {dimension_numbers = #tpu.dot_dimension_numbers<[1], [0], [0], [1], [0, 0, 1, 1], [], []>} : vector<2x32xf32>, vector<32x5xf32>, vector<2x5xf32> -> vector<2x5xf32>
    %c0_4 = arith.constant 0 : index
    %c0_5 = arith.constant 0 : index
    %4 = vector.load %arg1[%c0_4, %c0_5] : memref<2x32xf32, #tpu.memory_space<vmem>>, vector<2x32xf32>
    %c1 = arith.constant 1 : index
    %c0_6 = arith.constant 0 : index
    %c0_7 = arith.constant 0 : index
    %5 = vector.load %arg2[%c1, %c0_6, %c0_7] : memref<2x32x5xf32, #tpu.memory_space<vmem>>, vector<1x32x5xf32>
    %6 = vector.shape_cast %5 : vector<1x32x5xf32> to vector<32x5xf32>
    %cst_8 = arith.constant dense<0.000000e+00> : vector<2x5xf32>
    %7 = tpu.matmul %4, %6, %cst_8 {dimension_numbers = #tpu.dot_dimension_numbers<[1], [0], [0], [1], [0, 0, 1, 1], [], []>} : vector<2x32xf32>, vector<32x5xf32>, vector<2x5xf32> -> vector<2x5xf32>
    %8 = arith.addf %3, %7 : vector<2x5xf32>
    %c0_9 = arith.constant 0 : index
    %c0_10 = arith.constant 0 : index
    %9 = vector.load %arg3[%c0_9, %c0_10] : memref<1x5xf32, #tpu.memory_space<vmem>>, vector<1x5xf32>
    %10 = vector.broadcast %9 : vector<1x5xf32> to vector<2x5xf32>
    %11 = arith.addf %8, %10 : vector<2x5xf32>
    %c0_11 = arith.constant 0 : index
    %c0_12 = arith.constant 0 : index
    %12 = vector.load %arg4[%c0_11, %c0_12] : memref<2x5xf32, #tpu.memory_space<vmem>>, vector<2x5xf32>
    tpu.vector_store %arg4[%c0_11, %c0_12], %11 {strides = array<i32>} : memref<2x5xf32, #tpu.memory_space<vmem>>, vector<2x5xf32>,
    return
  }
}

</mosaic_0001>

<llo_original>
// kernel: rnn_model_forward.9
$region0: #{rnn_model_forward.9}
  #allocation0 [shape = 'u32[]', space=smem, size = 0x4, offset = 0x4, fixed_abs, tag = 'smem constant byte address 0x4 - core index']
  #allocation1 [shape = 'u32[144,128]{1,0:T(1,128)}', space=vmem, size = 0x12000, scoped, tag = 'internal scratch']
  %s0 = inlined_call_operand.vmem [shape: f32[2,32], index: 0, kind: input, shape index: {}]
  %s1 = inlined_call_operand.vmem [shape: f32[2,32], index: 1, kind: input, shape index: {}]
  %s2 = inlined_call_operand.vmem [shape: f32[2,32,5], index: 2, kind: input, shape index: {}]
  %s3 = inlined_call_operand.vmem [shape: f32[1,5], index: 3, kind: input, shape index: {}]
  %s4 = inlined_call_operand.hbm [shape: f32[2,5], index: 4, kind: output, shape index: {}]
  %s5 = sld [smem:[#allocation0]]
  $region26: #{rnn_model_forward.9} parent=0
    _
  %s7 = ssub.s32 1, %s5
  %s8 = scalar_select 0, %s7, %s5
  $region1: #{rnn_model_forward.9} parent=0
    #allocation2 [shape = 'u8[1024]{0}', space=vmem, size = 0x400, scoped, tag = 'output window, operand 0, single buffered']
    #allocation3 [shape = 's32[1]{0}', space=sflag, size = 0x4, scoped, tag = 'scoped memory for rnn_model_forward.9']
    %9 = vsyncpa [#allocation3], 0
    // Predicated region
    $region2: #{rnn_model_forward.9} parent=1 // pred_check
      _
    $region3: #{rnn_model_forward.9} parent=1 // pred_check_branch
      %11 = sbr.rel (0) target = $region5
    $region4: #{rnn_model_forward.9} parent=1 // pred_region
      _
    $region5: #{rnn_model_forward.9} parent=1 // pred_fallthru
      _
    // Predicated region
    $region6: #{rnn_model_forward.9} parent=1 // pred_check
      _
    $region7: #{rnn_model_forward.9} parent=1 // pred_check_branch
      %13 = sbr.rel (0) target = $region9
    $region8: #{rnn_model_forward.9} parent=1 // pred_region
      _
    $region9: #{rnn_model_forward.9} parent=1 // pred_fallthru
      _
    // Predicated region
    $region10: #{rnn_model_forward.9} parent=1 // pred_check
      _
    $region11: #{rnn_model_forward.9} parent=1 // pred_check_branch
      %15 = sbr.rel (0) target = $region13
    $region12: #{rnn_model_forward.9} parent=1 // pred_region
      _
    $region13: #{rnn_model_forward.9} parent=1 // pred_fallthru
      _
    // Predicated region
    $region14: #{rnn_model_forward.9} parent=1 // pred_check
      _
    $region15: #{rnn_model_forward.9} parent=1 // pred_check_branch
      %17 = sbr.rel (0) target = $region17
    $region16: #{rnn_model_forward.9} parent=1 // pred_region
      _
    $region17: #{rnn_model_forward.9} parent=1 // pred_fallthru
      _
    %v18 = vld [vmem:[%s0] sm:$0x3]
    %v19 = vld [vmem:[%s2] sm:$0xff]
    %v20 = vld [vmem:[%s2 + $0x8] sm:$0xff]
    %v21 = vld [vmem:[%s2 + $0x10] sm:$0xff]
    %v22 = vld [vmem:[%s2 + $0x18] sm:$0xff]
    %v23 = vld [vmem:[%s1] sm:$0x3]
    %s24 = scalar_lea.vmem %s2, 32
    %v25 = vld [vmem:[%s24] sm:$0xff]
    %v26 = vld [vmem:[%s24 + $0x8] sm:$0xff]
    %v27 = vld [vmem:[%s24 + $0x10] sm:$0xff]
    %v28 = vld [vmem:[%s24 + $0x18] sm:$0xff]
    %vm29 = vcmask 261120
    %v31 = vsel %vm29, %v23, 0
    %33 = vmatprep.subr.mxu0 0.0
    %34 = vmatpush1.msra.mxu0 %v25
    %35 = vmatprep.subr.mxu0 0.0
    %36 = vmatpush1.msra.mxu0 %v26
    %37 = vmatprep.subr.mxu0 0.0
    %38 = vmatpush1.msra.mxu0 %v27
    %39 = vmatprep.subr.mxu0 0.0
    %40 = vmatpush1.msra.mxu0 %v28
    %41 = vmatprep.subr.mxu0 0.0
    %42 = vmatpush1.msra.mxu0 0.0
    %43 = vmatprep.subr.mxu0 0.0
    %44 = vmatpush1.msra.mxu0 0.0
    %45 = vmatprep.subr.mxu0 0.0
    %46 = vmatpush1.msra.mxu0 0.0
    %47 = vmatprep.subr.mxu0 0.0
    %48 = vmatpush1.msra.mxu0 0.0
    %49 = vmatprep.subr.mxu0 0.0
    %50 = vmatpush1.msra.mxu0 0.0
    %51 = vmatprep.subr.mxu0 0.0
    %52 = vmatpush1.msra.mxu0 0.0
    %53 = vmatprep.subr.mxu0 0.0
    %54 = vmatpush1.msra.mxu0 0.0
    %55 = vmatprep.subr.mxu0 0.0
    %56 = vmatpush1.msra.mxu0 0.0
    %57 = vmatprep.subr.mxu0 0.0
    %58 = vmatpush1.msra.mxu0 0.0
    %59 = vmatprep.subr.mxu0 0.0
    %60 = vmatpush1.msra.mxu0 0.0
    %61 = vmatprep.subr.mxu0 0.0
    %62 = vmatpush1.msra.mxu0 0.0
    %63 = vmatprep.subr.mxu0 0.0
    %64 = vmatpush1.msra.mxu0 0.0
    %65 = vmatprep.subr.mxu0 0.0
    %66 = vmatpush1.msra.mxu0 0.0
    %67 = vmatprep.subr.mxu0 0.0
    %68 = vmatpush1.msra.mxu0 0.0
    %69 = vmatprep.subr.mxu0 0.0
    %70 = vmatpush1.msra.mxu0 0.0
    %71 = vmatprep.subr.mxu0 0.0
    %72 = vmatpush1.msra.mxu0 0.0
    %73 = vmatprep.subr.mxu0 0.0
    %74 = vmatpush1.msra.mxu0 0.0
    %75 = vmatprep.subr.mxu0 0.0
    %76 = vmatpush1.msra.mxu0 0.0
    %77 = vmatprep.subr.mxu0 0.0
    %78 = vmatpush1.msra.mxu0 0.0
    %79 = vmatprep.subr.mxu0 0.0
    %80 = vmatpush1.msra.mxu0 0.0
    %81 = vmatprep.subr.mxu0 0.0
    %82 = vmatpush1.msra.mxu0 0.0
    %83 = vmatprep.subr.mxu0 0.0
    %84 = vmatpush1.msra.mxu0 0.0
    %85 = vmatprep.subr.mxu0 0.0
    %86 = vmatpush1.msra.mxu0 0.0
    %87 = vmatprep.subr.mxu0 0.0
    %88 = vmatpush1.msra.mxu0 0.0
    %89 = vmatprep.subr.mxu0 0.0
    %90 = vmatpush1.msra.mxu0 0.0
    %91 = vmatprep.subr.mxu0 0.0
    %92 = vmatpush1.msra.mxu0 0.0
    %93 = vmatprep.subr.mxu0 0.0
    %94 = vmatpush1.msra.mxu0 0.0
    %95 = vmatprep.subr.mxu0 0.0
    %96 = vmatpush1.msra.mxu0 0.0
    %97 = vmatprep.mubr.f32.mxu0 0.0
    %98 = vmatmul.mubr.f32.gmra.mrb[0].mxu0 %v31
    %v99 = vpop.f32.mrb[0].mxu0
    %v100 = vadd.f32 0.0, %v99
    %v101 = vpop.f32.mrb[0].mxu0
    %102 = vdwg.mxu0
    %v104 = vsel %vm29, %v18, 0
    %106 = vmatprep.subr.mxu0 0.0
    %107 = vmatpush1.msra.mxu0 %v19
    %108 = vmatprep.subr.mxu0 0.0
    %109 = vmatpush1.msra.mxu0 %v20
    %110 = vmatprep.subr.mxu0 0.0
    %111 = vmatpush1.msra.mxu0 %v21
    %112 = vmatprep.subr.mxu0 0.0
    %113 = vmatpush1.msra.mxu0 %v22
    %114 = vmatprep.subr.mxu0 0.0
    %115 = vmatpush1.msra.mxu0 0.0
    %116 = vmatprep.subr.mxu0 0.0
    %117 = vmatpush1.msra.mxu0 0.0
    %118 = vmatprep.subr.mxu0 0.0
    %119 = vmatpush1.msra.mxu0 0.0
    %120 = vmatprep.subr.mxu0 0.0
    %121 = vmatpush1.msra.mxu0 0.0
    %122 = vmatprep.subr.mxu0 0.0
    %123 = vmatpush1.msra.mxu0 0.0
    %124 = vmatprep.subr.mxu0 0.0
    %125 = vmatpush1.msra.mxu0 0.0
    %126 = vmatprep.subr.mxu0 0.0
    %127 = vmatpush1.msra.mxu0 0.0
    %128 = vmatprep.subr.mxu0 0.0
    %129 = vmatpush1.msra.mxu0 0.0
    %130 = vmatprep.subr.mxu0 0.0
    %131 = vmatpush1.msra.mxu0 0.0
    %132 = vmatprep.subr.mxu0 0.0
    %133 = vmatpush1.msra.mxu0 0.0
    %134 = vmatprep.subr.mxu0 0.0
    %135 = vmatpush1.msra.mxu0 0.0
    %136 = vmatprep.subr.mxu0 0.0
    %137 = vmatpush1.msra.mxu0 0.0
    %138 = vmatprep.subr.mxu0 0.0
    %139 = vmatpush1.msra.mxu0 0.0
    %140 = vmatprep.subr.mxu0 0.0
    %141 = vmatpush1.msra.mxu0 0.0
    %142 = vmatprep.subr.mxu0 0.0
    %143 = vmatpush1.msra.mxu0 0.0
    %144 = vmatprep.subr.mxu0 0.0
    %145 = vmatpush1.msra.mxu0 0.0
    %146 = vmatprep.subr.mxu0 0.0
    %147 = vmatpush1.msra.mxu0 0.0
    %148 = vmatprep.subr.mxu0 0.0
    %149 = vmatpush1.msra.mxu0 0.0
    %150 = vmatprep.subr.mxu0 0.0
    %151 = vmatpush1.msra.mxu0 0.0
    %152 = vmatprep.subr.mxu0 0.0
    %153 = vmatpush1.msra.mxu0 0.0
    %154 = vmatprep.subr.mxu0 0.0
    %155 = vmatpush1.msra.mxu0 0.0
    %156 = vmatprep.subr.mxu0 0.0
    %157 = vmatpush1.msra.mxu0 0.0
    %158 = vmatprep.subr.mxu0 0.0
    %159 = vmatpush1.msra.mxu0 0.0
    %160 = vmatprep.subr.mxu0 0.0
    %161 = vmatpush1.msra.mxu0 0.0
    %162 = vmatprep.subr.mxu0 0.0
    %163 = vmatpush1.msra.mxu0 0.0
    %164 = vmatprep.subr.mxu0 0.0
    %165 = vmatpush1.msra.mxu0 0.0
    %166 = vmatprep.subr.mxu0 0.0
    %167 = vmatpush1.msra.mxu0 0.0
    %168 = vmatprep.subr.mxu0 0.0
    %169 = vmatpush1.msra.mxu0 0.0
    %170 = vmatprep.mubr.f32.mxu0 0.0
    %171 = vmatmul.mubr.f32.gmra.mrb[0].mxu0 %v104
    %v172 = vpop.f32.mrb[0].mxu0
    %v173 = vadd.f32 %v100, %v172
    %v174 = vpop.f32.mrb[0].mxu0
    %175 = vdwg.mxu0
    %v176 = vld [vmem:[%s3] sm:$0x1]
    %v178 = vlaneseq
    %v179 = vshrl.u32 %v178, 7
    %v180 = vsub.s32 0, %v179
    %v181 = vrot.slane %v176, %v180
    %v183 = vadd.f32 %v173, %v181
    %vm184 = vcmask 33792
    %185 = vst.msk [vmem:[#allocation2] sm:$0x3] %vm184, %v183
    // Predicated region
    $region18: #{rnn_model_forward.9} parent=1 // pred_check
      _
    $region19: #{rnn_model_forward.9} parent=1 // pred_check_branch
      %187 = sbr.rel (0) target = $region21
    $region20: #{rnn_model_forward.9} parent=1 // pred_region
      %s189 = ssub.s32 32, 32
      %190 = vsyncadd [#allocation3], %s189
      %s192 = sshll.u32 [#allocation2], 4
      %s193 = int_to_ptr.vmem [resolvable:$true] %s192
      %195 = dma.vmem_to_hbm [thread:$0]  %s193, 32, %s4, [#allocation3]
    $region21: #{rnn_model_forward.9} parent=1 // pred_fallthru
      _
    // Predicated region
    $region22: #{rnn_model_forward.9} parent=1 // pred_check
      _
    $region23: #{rnn_model_forward.9} parent=1 // pred_check_branch
      %197 = sbr.rel (0) target = $region25
    $region24: #{rnn_model_forward.9} parent=1 // pred_region
      %198 = dma.done [#allocation3], 32
    $region25: #{rnn_model_forward.9} parent=1 // pred_fallthru
      _
    %199 = vsyncpa [#allocation3], 1

// kernel: rnn_model_forward.7
$region0: #{rnn_model_forward.7}
  #allocation0 [shape = 'u32[]', space=smem, size = 0x4, offset = 0x4, fixed_abs, tag = 'smem constant byte address 0x4 - core index']
  #allocation1 [shape = 'u32[144,128]{1,0:T(1,128)}', space=vmem, size = 0x12000, scoped, tag = 'internal scratch']
  %s0 = inlined_call_operand.vmem [shape: f32[2,16,32], index: 0, kind: input, shape index: {}]
  %s1 = inlined_call_operand.vmem [shape: f32[2,32,256], index: 1, kind: input, shape index: {}]
  %s2 = inlined_call_operand.vmem [shape: f32[1,256], index: 2, kind: input, shape index: {}]
  %s3 = inlined_call_operand.vmem [shape: f32[16,256], index: 3, kind: output, shape index: {}]
  %s4 = sld [smem:[#allocation0]]
  $region22: #{rnn_model_forward.7} parent=0
    _
  %s6 = ssub.s32 1, %s4
  %s7 = scalar_select 0, %s6, %s4
  // Predicated region
  $region2: #{rnn_model_forward.7} parent=0 // pred_check
    _
  $region3: #{rnn_model_forward.7} parent=0 // pred_check_branch
    %9 = sbr.rel (0) target = $region5
  $region4: #{rnn_model_forward.7} parent=0 // pred_region
    _
  $region5: #{rnn_model_forward.7} parent=0 // pred_fallthru
    _
  // Predicated region
  $region6: #{rnn_model_forward.7} parent=0 // pred_check
    _
  $region7: #{rnn_model_forward.7} parent=0 // pred_check_branch
    %11 = sbr.rel (0) target = $region9
  $region8: #{rnn_model_forward.7} parent=0 // pred_region
    _
  $region9: #{rnn_model_forward.7} parent=0 // pred_fallthru
    _
  // Predicated region
  $region10: #{rnn_model_forward.7} parent=0 // pred_check
    _
  $region11: #{rnn_model_forward.7} parent=0 // pred_check_branch
    %13 = sbr.rel (0) target = $region13
  $region12: #{rnn_model_forward.7} parent=0 // pred_region
    _
  $region13: #{rnn_model_forward.7} parent=0 // pred_fallthru
    _
  %v14 = vld [vmem:[%s0] sm:$0xff]
  %v15 = vld [vmem:[%s0 + $0x8] sm:$0xff]
  %v16 = vld [vmem:[%s1] sm:$0xff]
  %v17 = vld [vmem:[%s1 + $0x8] sm:$0xff]
  %v18 = vld [vmem:[%s1 + $0x10] sm:$0xff]
  %v19 = vld [vmem:[%s1 + $0x18] sm:$0xff]
  %v20 = vld [vmem:[%s1 + $0x20] sm:$0xff]
  %v21 = vld [vmem:[%s1 + $0x28] sm:$0xff]
  %v22 = vld [vmem:[%s1 + $0x30] sm:$0xff]
  %v23 = vld [vmem:[%s1 + $0x38] sm:$0xff]
  %s24 = scalar_lea.vmem %s0, 16
  %v25 = vld [vmem:[%s24] sm:$0xff]
  %v26 = vld [vmem:[%s24 + $0x8] sm:$0xff]
  %s27 = scalar_lea.vmem %s1, 64
  %v28 = vld [vmem:[%s27] sm:$0xff]
  %v29 = vld [vmem:[%s27 + $0x8] sm:$0xff]
  %v30 = vld [vmem:[%s27 + $0x10] sm:$0xff]
  %v31 = vld [vmem:[%s27 + $0x18] sm:$0xff]
  %v32 = vld [vmem:[%s27 + $0x20] sm:$0xff]
  %v33 = vld [vmem:[%s27 + $0x28] sm:$0xff]
  %v34 = vld [vmem:[%s27 + $0x30] sm:$0xff]
  %v35 = vld [vmem:[%s27 + $0x38] sm:$0xff]
  %vm36 = vcmask 261120
  %v38 = vsel %vm36, %v25, 0
  %v41 = vsel %vm36, %v26, 0
  %43 = vmatprep.subr.mxu0 %v29
  %44 = vmatpush1.msra.mxu0 %v28
  %45 = vmatprep.subr.mxu0 %v31
  %46 = vmatpush1.msra.mxu0 %v30
  %47 = vmatprep.subr.mxu0 %v33
  %48 = vmatpush1.msra.mxu0 %v32
  %49 = vmatprep.subr.mxu0 %v35
  %50 = vmatpush1.msra.mxu0 %v34
  %51 = vmatprep.subr.mxu0 0.0
  %52 = vmatpush1.msra.mxu0 0.0
  %53 = vmatprep.subr.mxu0 0.0
  %54 = vmatpush1.msra.mxu0 0.0
  %55 = vmatprep.subr.mxu0 0.0
  %56 = vmatpush1.msra.mxu0 0.0
  %57 = vmatprep.subr.mxu0 0.0
  %58 = vmatpush1.msra.mxu0 0.0
  %59 = vmatprep.subr.mxu0 0.0
  %60 = vmatpush1.msra.mxu0 0.0
  %61 = vmatprep.subr.mxu0 0.0
  %62 = vmatpush1.msra.mxu0 0.0
  %63 = vmatprep.subr.mxu0 0.0
  %64 = vmatpush1.msra.mxu0 0.0
  %65 = vmatprep.subr.mxu0 0.0
  %66 = vmatpush1.msra.mxu0 0.0
  %67 = vmatprep.subr.mxu0 0.0
  %68 = vmatpush1.msra.mxu0 0.0
  %69 = vmatprep.subr.mxu0 0.0
  %70 = vmatpush1.msra.mxu0 0.0
  %71 = vmatprep.subr.mxu0 0.0
  %72 = vmatpush1.msra.mxu0 0.0
  %73 = vmatprep.subr.mxu0 0.0
  %74 = vmatpush1.msra.mxu0 0.0
  %75 = vmatprep.subr.mxu0 0.0
  %76 = vmatpush1.msra.mxu0 0.0
  %77 = vmatprep.subr.mxu0 0.0
  %78 = vmatpush1.msra.mxu0 0.0
  %79 = vmatprep.subr.mxu0 0.0
  %80 = vmatpush1.msra.mxu0 0.0
  %81 = vmatprep.subr.mxu0 0.0
  %82 = vmatpush1.msra.mxu0 0.0
  %83 = vmatprep.subr.mxu0 0.0
  %84 = vmatpush1.msra.mxu0 0.0
  %85 = vmatprep.subr.mxu0 0.0
  %86 = vmatpush1.msra.mxu0 0.0
  %87 = vmatprep.subr.mxu0 0.0
  %88 = vmatpush1.msra.mxu0 0.0
  %89 = vmatprep.subr.mxu0 0.0
  %90 = vmatpush1.msra.mxu0 0.0
  %91 = vmatprep.subr.mxu0 0.0
  %92 = vmatpush1.msra.mxu0 0.0
  %93 = vmatprep.subr.mxu0 0.0
  %94 = vmatpush1.msra.mxu0 0.0
  %95 = vmatprep.subr.mxu0 0.0
  %96 = vmatpush1.msra.mxu0 0.0
  %97 = vmatprep.subr.mxu0 0.0
  %98 = vmatpush1.msra.mxu0 0.0
  %99 = vmatprep.subr.mxu0 0.0
  %100 = vmatpush1.msra.mxu0 0.0
  %101 = vmatprep.subr.mxu0 0.0
  %102 = vmatpush1.msra.mxu0 0.0
  %103 = vmatprep.subr.mxu0 0.0
  %104 = vmatpush1.msra.mxu0 0.0
  %105 = vmatprep.subr.mxu0 0.0
  %106 = vmatpush1.msra.mxu0 0.0
  %107 = vmatprep.mubr.f32.mxu0 0.0
  %108 = vmatmul.mubr.f32.gmra.mrb[0].mxu0 %v38
  %v109 = vpop.f32.mrb[0].mxu0
  %v110 = vadd.f32 0.0, %v109
  %v111 = vpop.f32.mrb[0].mxu0
  %v112 = vadd.f32 0.0, %v111
  %113 = vmatprep.mubr.f32.mxu0 0.0
  %114 = vmatmul.mubr.f32.gmra.mrb[0].mxu0 %v41
  %v115 = vpop.f32.mrb[0].mxu0
  %v116 = vadd.f32 0.0, %v115
  %v117 = vpop.f32.mrb[0].mxu0
  %v118 = vadd.f32 0.0, %v117
  %119 = vdwg.mxu0
  %v121 = vsel %vm36, %v14, 0
  %v124 = vsel %vm36, %v15, 0
  %126 = vmatprep.subr.mxu0 %v17
  %127 = vmatpush1.msra.mxu0 %v16
  %128 = vmatprep.subr.mxu0 %v19
  %129 = vmatpush1.msra.mxu0 %v18
  %130 = vmatprep.subr.mxu0 %v21
  %131 = vmatpush1.msra.mxu0 %v20
  %132 = vmatprep.subr.mxu0 %v23
  %133 = vmatpush1.msra.mxu0 %v22
  %134 = vmatprep.subr.mxu0 0.0
  %135 = vmatpush1.msra.mxu0 0.0
  %136 = vmatprep.subr.mxu0 0.0
  %137 = vmatpush1.msra.mxu0 0.0
  %138 = vmatprep.subr.mxu0 0.0
  %139 = vmatpush1.msra.mxu0 0.0
  %140 = vmatprep.subr.mxu0 0.0
  %141 = vmatpush1.msra.mxu0 0.0
  %142 = vmatprep.subr.mxu0 0.0
  %143 = vmatpush1.msra.mxu0 0.0
  %144 = vmatprep.subr.mxu0 0.0
  %145 = vmatpush1.msra.mxu0 0.0
  %146 = vmatprep.subr.mxu0 0.0
  %147 = vmatpush1.msra.mxu0 0.0
  %148 = vmatprep.subr.mxu0 0.0
  %149 = vmatpush1.msra.mxu0 0.0
  %150 = vmatprep.subr.mxu0 0.0
  %151 = vmatpush1.msra.mxu0 0.0
  %152 = vmatprep.subr.mxu0 0.0
  %153 = vmatpush1.msra.mxu0 0.0
  %154 = vmatprep.subr.mxu0 0.0
  %155 = vmatpush1.msra.mxu0 0.0
  %156 = vmatprep.subr.mxu0 0.0
  %157 = vmatpush1.msra.mxu0 0.0
  %158 = vmatprep.subr.mxu0 0.0
  %159 = vmatpush1.msra.mxu0 0.0
  %160 = vmatprep.subr.mxu0 0.0
  %161 = vmatpush1.msra.mxu0 0.0
  %162 = vmatprep.subr.mxu0 0.0
  %163 = vmatpush1.msra.mxu0 0.0
  %164 = vmatprep.subr.mxu0 0.0
  %165 = vmatpush1.msra.mxu0 0.0
  %166 = vmatprep.subr.mxu0 0.0
  %167 = vmatpush1.msra.mxu0 0.0
  %168 = vmatprep.subr.mxu0 0.0
  %169 = vmatpush1.msra.mxu0 0.0
  %170 = vmatprep.subr.mxu0 0.0
  %171 = vmatpush1.msra.mxu0 0.0
  %172 = vmatprep.subr.mxu0 0.0
  %173 = vmatpush1.msra.mxu0 0.0
  %174 = vmatprep.subr.mxu0 0.0
  %175 = vmatpush1.msra.mxu0 0.0
  %176 = vmatprep.subr.mxu0 0.0
  %177 = vmatpush1.msra.mxu0 0.0
  %178 = vmatprep.subr.mxu0 0.0
  %179 = vmatpush1.msra.mxu0 0.0
  %180 = vmatprep.subr.mxu0 0.0
  %181 = vmatpush1.msra.mxu0 0.0
  %182 = vmatprep.subr.mxu0 0.0
  %183 = vmatpush1.msra.mxu0 0.0
  %184 = vmatprep.subr.mxu0 0.0
  %185 = vmatpush1.msra.mxu0 0.0
  %186 = vmatprep.subr.mxu0 0.0
  %187 = vmatpush1.msra.mxu0 0.0
  %188 = vmatprep.subr.mxu0 0.0
  %189 = vmatpush1.msra.mxu0 0.0
  %190 = vmatprep.mubr.f32.mxu0 0.0
  %191 = vmatmul.mubr.f32.gmra.mrb[0].mxu0 %v121
  %v192 = vpop.f32.mrb[0].mxu0
  %v193 = vadd.f32 %v110, %v192
  %v194 = vpop.f32.mrb[0].mxu0
  %v195 = vadd.f32 %v112, %v194
  %196 = vmatprep.mubr.f32.mxu0 0.0
  %197 = vmatmul.mubr.f32.gmra.mrb[0].mxu0 %v124
  %v198 = vpop.f32.mrb[0].mxu0
  %v199 = vadd.f32 %v116, %v198
  %v200 = vpop.f32.mrb[0].mxu0
  %v201 = vadd.f32 %v118, %v200
  %202 = vdwg.mxu0
  %v203 = vld [vmem:[%s2] sm:$0x3]
  %v205 = vlaneseq
  %v206 = vshrl.u32 %v205, 7
  %v207 = vsub.s32 0, %v206
  %v208 = vrot.slane %v203, %v207
  %v209 = vlaneseq
  %v210 = vshrl.u32 %v209, 7
  %v211 = vsub.s32 1, %v210
  %v212 = vrot.slane %v203, %v211
  %v215 = vadd.f32 %v193, %v208
  %v216 = vadd.f32 %v195, %v212
  %v217 = vadd.f32 %v199, %v208
  %v218 = vadd.f32 %v201, %v212
  %219 = vst [vmem:[%s3] sm:$0xff] %v215
  %220 = vst [vmem:[%s3 + $0x8] sm:$0xff] %v216
  %221 = vst [vmem:[%s3 + $0x10] sm:$0xff] %v217
  %222 = vst [vmem:[%s3 + $0x18] sm:$0xff] %v218
  // Predicated region
  $region14: #{rnn_model_forward.7} parent=0 // pred_check
    _
  $region15: #{rnn_model_forward.7} parent=0 // pred_check_branch
    %224 = sbr.rel (0) target = $region17
  $region16: #{rnn_model_forward.7} parent=0 // pred_region
    _
  $region17: #{rnn_model_forward.7} parent=0 // pred_fallthru
    _
  // Predicated region
  $region18: #{rnn_model_forward.7} parent=0 // pred_check
    _
  $region19: #{rnn_model_forward.7} parent=0 // pred_check_branch
    %226 = sbr.rel (0) target = $region21
  $region20: #{rnn_model_forward.7} parent=0 // pred_region
    _
  $region21: #{rnn_model_forward.7} parent=0 // pred_fallthru
    _

// kernel: rnn_model_forward.5
$region0: #{rnn_model_forward.5}
  #allocation0 [shape = 'u32[]', space=smem, size = 0x4, offset = 0x4, fixed_abs, tag = 'smem constant byte address 0x4 - core index']
  #allocation1 [shape = 'u32[144,128]{1,0:T(1,128)}', space=vmem, size = 0x12000, scoped, tag = 'internal scratch']
  %s0 = inlined_call_operand.vmem [shape: f32[1,16,32], index: 0, kind: input, shape index: {}]
  %s1 = inlined_call_operand.vmem [shape: f32[1,32,256], index: 1, kind: input, shape index: {}]
  %s2 = inlined_call_operand.vmem [shape: f32[1,256], index: 2, kind: input, shape index: {}]
  %s3 = inlined_call_operand.vmem [shape: f32[16,256], index: 3, kind: output, shape index: {}]
  %s4 = sld [smem:[#allocation0]]
  $region22: #{rnn_model_forward.5} parent=0
    _
  %s6 = ssub.s32 1, %s4
  %s7 = scalar_select 0, %s6, %s4
  // Predicated region
  $region2: #{rnn_model_forward.5} parent=0 // pred_check
    _
  $region3: #{rnn_model_forward.5} parent=0 // pred_check_branch
    %9 = sbr.rel (0) target = $region5
  $region4: #{rnn_model_forward.5} parent=0 // pred_region
    _
  $region5: #{rnn_model_forward.5} parent=0 // pred_fallthru
    _
  // Predicated region
  $region6: #{rnn_model_forward.5} parent=0 // pred_check
    _
  $region7: #{rnn_model_forward.5} parent=0 // pred_check_branch
    %11 = sbr.rel (0) target = $region9
  $region8: #{rnn_model_forward.5} parent=0 // pred_region
    _
  $region9: #{rnn_model_forward.5} parent=0 // pred_fallthru
    _
  // Predicated region
  $region10: #{rnn_model_forward.5} parent=0 // pred_check
    _
  $region11: #{rnn_model_forward.5} parent=0 // pred_check_branch
    %13 = sbr.rel (0) target = $region13
  $region12: #{rnn_model_forward.5} parent=0 // pred_region
    _
  $region13: #{rnn_model_forward.5} parent=0 // pred_fallthru
    _
  %v14 = vld [vmem:[%s0] sm:$0xff]
  %v15 = vld [vmem:[%s0 + $0x8] sm:$0xff]
  %v16 = vld [vmem:[%s1] sm:$0xff]
  %v17 = vld [vmem:[%s1 + $0x8] sm:$0xff]
  %v18 = vld [vmem:[%s1 + $0x10] sm:$0xff]
  %v19 = vld [vmem:[%s1 + $0x18] sm:$0xff]
  %v20 = vld [vmem:[%s1 + $0x20] sm:$0xff]
  %v21 = vld [vmem:[%s1 + $0x28] sm:$0xff]
  %v22 = vld [vmem:[%s1 + $0x30] sm:$0xff]
  %v23 = vld [vmem:[%s1 + $0x38] sm:$0xff]
  %v24 = vld [vmem:[%s2] sm:$0x3]
  %v26 = vlaneseq
  %v27 = vshrl.u32 %v26, 7
  %v28 = vsub.s32 0, %v27
  %v29 = vrot.slane %v24, %v28
  %v30 = vlaneseq
  %v31 = vshrl.u32 %v30, 7
  %v32 = vsub.s32 1, %v31
  %v33 = vrot.slane %v24, %v32
  %vm36 = vcmask 261120
  %v38 = vsel %vm36, %v14, 0
  %v41 = vsel %vm36, %v15, 0
  %43 = vmatprep.subr.mxu0 %v17
  %44 = vmatpush1.msra.mxu0 %v16
  %45 = vmatprep.subr.mxu0 %v19
  %46 = vmatpush1.msra.mxu0 %v18
  %47 = vmatprep.subr.mxu0 %v21
  %48 = vmatpush1.msra.mxu0 %v20
  %49 = vmatprep.subr.mxu0 %v23
  %50 = vmatpush1.msra.mxu0 %v22
  %51 = vmatprep.subr.mxu0 0.0
  %52 = vmatpush1.msra.mxu0 0.0
  %53 = vmatprep.subr.mxu0 0.0
  %54 = vmatpush1.msra.mxu0 0.0
  %55 = vmatprep.subr.mxu0 0.0
  %56 = vmatpush1.msra.mxu0 0.0
  %57 = vmatprep.subr.mxu0 0.0
  %58 = vmatpush1.msra.mxu0 0.0
  %59 = vmatprep.subr.mxu0 0.0
  %60 = vmatpush1.msra.mxu0 0.0
  %61 = vmatprep.subr.mxu0 0.0
  %62 = vmatpush1.msra.mxu0 0.0
  %63 = vmatprep.subr.mxu0 0.0
  %64 = vmatpush1.msra.mxu0 0.0
  %65 = vmatprep.subr.mxu0 0.0
  %66 = vmatpush1.msra.mxu0 0.0
  %67 = vmatprep.subr.mxu0 0.0
  %68 = vmatpush1.msra.mxu0 0.0
  %69 = vmatprep.subr.mxu0 0.0
  %70 = vmatpush1.msra.mxu0 0.0
  %71 = vmatprep.subr.mxu0 0.0
  %72 = vmatpush1.msra.mxu0 0.0
  %73 = vmatprep.subr.mxu0 0.0
  %74 = vmatpush1.msra.mxu0 0.0
  %75 = vmatprep.subr.mxu0 0.0
  %76 = vmatpush1.msra.mxu0 0.0
  %77 = vmatprep.subr.mxu0 0.0
  %78 = vmatpush1.msra.mxu0 0.0
  %79 = vmatprep.subr.mxu0 0.0
  %80 = vmatpush1.msra.mxu0 0.0
  %81 = vmatprep.subr.mxu0 0.0
  %82 = vmatpush1.msra.mxu0 0.0
  %83 = vmatprep.subr.mxu0 0.0
  %84 = vmatpush1.msra.mxu0 0.0
  %85 = vmatprep.subr.mxu0 0.0
  %86 = vmatpush1.msra.mxu0 0.0
  %87 = vmatprep.subr.mxu0 0.0
  %88 = vmatpush1.msra.mxu0 0.0
  %89 = vmatprep.subr.mxu0 0.0
  %90 = vmatpush1.msra.mxu0 0.0
  %91 = vmatprep.subr.mxu0 0.0
  %92 = vmatpush1.msra.mxu0 0.0
  %93 = vmatprep.subr.mxu0 0.0
  %94 = vmatpush1.msra.mxu0 0.0
  %95 = vmatprep.subr.mxu0 0.0
  %96 = vmatpush1.msra.mxu0 0.0
  %97 = vmatprep.subr.mxu0 0.0
  %98 = vmatpush1.msra.mxu0 0.0
  %99 = vmatprep.subr.mxu0 0.0
  %100 = vmatpush1.msra.mxu0 0.0
  %101 = vmatprep.subr.mxu0 0.0
  %102 = vmatpush1.msra.mxu0 0.0
  %103 = vmatprep.subr.mxu0 0.0
  %104 = vmatpush1.msra.mxu0 0.0
  %105 = vmatprep.subr.mxu0 0.0
  %106 = vmatpush1.msra.mxu0 0.0
  %107 = vmatprep.mubr.f32.mxu0 0.0
  %108 = vmatmul.mubr.f32.gmra.mrb[0].mxu0 %v38
  %v109 = vpop.f32.mrb[0].mxu0
  %v110 = vadd.f32 %v29, %v109
  %v111 = vpop.f32.mrb[0].mxu0
  %v112 = vadd.f32 %v33, %v111
  %113 = vmatprep.mubr.f32.mxu0 0.0
  %114 = vmatmul.mubr.f32.gmra.mrb[0].mxu0 %v41
  %v115 = vpop.f32.mrb[0].mxu0
  %v116 = vadd.f32 %v29, %v115
  %v117 = vpop.f32.mrb[0].mxu0
  %v118 = vadd.f32 %v33, %v117
  %119 = vdwg.mxu0
  %120 = vst [vmem:[%s3] sm:$0xff] %v110
  %121 = vst [vmem:[%s3 + $0x8] sm:$0xff] %v112
  %122 = vst [vmem:[%s3 + $0x10] sm:$0xff] %v116
  %123 = vst [vmem:[%s3 + $0x18] sm:$0xff] %v118
  // Predicated region
  $region14: #{rnn_model_forward.5} parent=0 // pred_check
    _
  $region15: #{rnn_model_forward.5} parent=0 // pred_check_branch
    %125 = sbr.rel (0) target = $region17
  $region16: #{rnn_model_forward.5} parent=0 // pred_region
    _
  $region17: #{rnn_model_forward.5} parent=0 // pred_fallthru
    _
  // Predicated region
  $region18: #{rnn_model_forward.5} parent=0 // pred_check
    _
  $region19: #{rnn_model_forward.5} parent=0 // pred_check_branch
    %127 = sbr.rel (0) target = $region21
  $region20: #{rnn_model_forward.5} parent=0 // pred_region
    _
  $region21: #{rnn_model_forward.5} parent=0 // pred_fallthru
    _

// kernel: rnn_model_forward.6
$region0: #{rnn_model_forward.6}
  #allocation0 [shape = 'u32[]', space=smem, size = 0x4, offset = 0x4, fixed_abs, tag = 'smem constant byte address 0x4 - core index']
  #allocation1 [shape = 'u32[144,128]{1,0:T(1,128)}', space=vmem, size = 0x12000, scoped, tag = 'internal scratch']
  #allocation2 [shape = 'f32[2,32]{1,0:T(2,128)}', space=vmem, size = 0x400, scoped, tag = 'scratch operand']
  #allocation3 [shape = 'f32[2,32]{1,0:T(2,128)}', space=vmem, size = 0x400, scoped, tag = 'scratch operand']
  %s0 = inlined_call_operand.vmem [shape: f32[8,2,256], index: 0, kind: input, shape index: {}]
  %s1 = inlined_call_operand.vmem [shape: f32[2,32,128], index: 1, kind: input, shape index: {}]
  %s2 = inlined_call_operand.vmem [shape: f32[2,8,2,32], index: 2, kind: output, shape index: {}]
  %s3 = sld [smem:[#allocation0]]
  $region86: #{rnn_model_forward.6} parent=0
    _
  %s5 = ssub.s32 1, %s3
  %s6 = scalar_select 0, %s5, %s3
  $region1: #{rnn_model_forward.6} parent=0
    #allocation4 [shape = 'u8[16384]{0}', space=vmem, size = 0x4000, scoped, tag = 'input window, operand 0']
    loop: start=0, step=1, limit=4
    $region2: #{rnn_model_forward.6} parent=1 // loop_pre_header
      _
    $region3: #{rnn_model_forward.6} parent=1 // loop_header
      %s8 = sphi 0, %s12
      %p9 = scmp.ge.s32.totalorder %s8, 4
      %s15 = sphi 0, %s27
      %s16 = sphi 0, %s23
      %s17 = sphi 0, %s15
      %s18 = sphi 0, %s16
      %s19 = sphi 0, %s17
      %s20 = sphi 0, %s18
      %s42 = sphi 0, %s44
      %s45 = sphi 0, %s42
      %s46 = sphi 0, %s45
      %s62 = sphi 0, %s46
      %s68 = sphi 0, %s70
      %s71 = sphi 0, %s68
      %s72 = sphi 0, %s71
      %s88 = sphi 0, %s72
      %s106 = sphi 0, %s108
      %s109 = sphi 0, %s106
      %s110 = sphi 0, %s109
      %s126 = sphi 0, %s110
    $region4: #{rnn_model_forward.6} parent=1 // loop_header_branch
      %11 = sbr.rel (%p9) target = $region8
    $region5: #{rnn_model_forward.6} parent=1 // loop_body
      %s13 = ssub.s32 %s8, 1
      %s14 = ssub.s32 %s8, 2
      %s21 = sadd.s32 1, %s16
      %p22 = scmp.ge.s32.totalorder %s21, 1
      %s23 = scalar_select %p22, 0, %s21
      %s24 = sadd.s32 1, %s15
      %s25 = scalar_select %p22, %s24, %s15
      %p26 = scmp.ge.s32.totalorder %s25, 2
      %s27 = scalar_select %p26, 0, %s25
      %s28 = ssub.s32 1, %s15
      %s29 = smul.u32 %s28, %s16
      %s30 = ssub.s32 0, %s16
      %s31 = smul.u32 %s15, %s30
      %s32 = sadd.s32 %s29, %s31
      %s33 = ssub.s32 1, %s27
      %s34 = smul.u32 %s33, %s23
      %s35 = ssub.s32 0, %s23
      %s36 = smul.u32 %s27, %s35
      %s37 = sadd.s32 %s34, %s36
      %s38 = ssub.s32 %s32, %s37
      %s39 = ssub.s32 %s15, %s27
      %s40 = sor.u32 %s38, %s39
      %p41 = scmp.eq.s32.totalorder %s40, 0
      %s43 = sadd.s32 %s42, 1
      %s44 = scalar_select %p41, %s42, %s43
      %p47 = pneg %p41
      %p48 = scmp.eq.s32.totalorder %s8, 1
      %p49 = por %p47, %p48
      %p50 = scmp.ne.s32.totalorder %s42, %s45
      %p51 = scmp.eq.s32.totalorder %s8, 0
      %p52 = por %p50, %p51
      %p53 = scmp.ne.s32.totalorder %s42, %s45
      %p54 = scmp.eq.s32.totalorder %s13, 1
      %p55 = por %p53, %p54
      %p56 = scmp.ne.s32.totalorder %s45, %s46
      %p57 = scmp.eq.s32.totalorder %s13, 0
      %p58 = por %p56, %p57
      %p59 = scmp.ne.s32.totalorder %s45, %s46
      %p60 = scmp.eq.s32.totalorder %s14, 1
      %p61 = por %p59, %p60
      %p63 = scmp.ne.s32.totalorder %s46, %s62
      %p64 = scmp.eq.s32.totalorder %s14, 0
      %p65 = por %p63, %p64
      %s66 = ssub.s32 %s15, %s27
      %p67 = scmp.eq.s32.totalorder %s66, 0
      %s69 = sadd.s32 %s68, 1
      %s70 = scalar_select %p67, %s68, %s69
      %p73 = pneg %p67
      %p74 = scmp.eq.s32.totalorder %s8, 1
      %p75 = por %p73, %p74
      %p76 = scmp.ne.s32.totalorder %s68, %s71
      %p77 = scmp.eq.s32.totalorder %s8, 0
      %p78 = por %p76, %p77
      %p79 = scmp.ne.s32.totalorder %s68, %s71
      %p80 = scmp.eq.s32.totalorder %s13, 1
      %p81 = por %p79, %p80
      %p82 = scmp.ne.s32.totalorder %s71, %s72
      %p83 = scmp.eq.s32.totalorder %s13, 0
      %p84 = por %p82, %p83
      %p85 = scmp.ne.s32.totalorder %s71, %s72
      %p86 = scmp.eq.s32.totalorder %s14, 1
      %p87 = por %p85, %p86
      %p89 = scmp.ne.s32.totalorder %s72, %s88
      %p90 = scmp.eq.s32.totalorder %s14, 0
      %p91 = por %p89, %p90
      %s92 = ssub.s32 1, %s15
      %s93 = smul.u32 %s92, %s16
      %s94 = ssub.s32 0, %s16
      %s95 = smul.u32 %s15, %s94
      %s96 = sadd.s32 %s93, %s95
      %s97 = ssub.s32 1, %s27
      %s98 = smul.u32 %s97, %s23
      %s99 = ssub.s32 0, %s23
      %s100 = smul.u32 %s27, %s99
      %s101 = sadd.s32 %s98, %s100
      %s102 = ssub.s32 %s15, %s27
      %s103 = ssub.s32 %s96, %s101
      %s104 = sor.u32 %s102, %s103
      %p105 = scmp.eq.s32.totalorder %s104, 0
      %s107 = sadd.s32 %s106, 1
      %s108 = scalar_select %p105, %s106, %s107
      %p111 = pneg %p105
      %p112 = scmp.eq.s32.totalorder %s8, 1
      %p113 = por %p111, %p112
      %p114 = scmp.ne.s32.totalorder %s106, %s109
      %p115 = scmp.eq.s32.totalorder %s8, 0
      %p116 = por %p114, %p115
      %p117 = scmp.ne.s32.totalorder %s106, %s109
      %p118 = scmp.eq.s32.totalorder %s13, 1
      %p119 = por %p117, %p118
      %p120 = scmp.ne.s32.totalorder %s109, %s110
      %p121 = scmp.eq.s32.totalorder %s13, 0
      %p122 = por %p120, %p121
      %p123 = scmp.ne.s32.totalorder %s109, %s110
      %p124 = scmp.eq.s32.totalorder %s14, 1
      %p125 = por %p123, %p124
      %p127 = scmp.ne.s32.totalorder %s110, %s126
      %p128 = scmp.eq.s32.totalorder %s14, 0
      %p129 = por %p127, %p128
      %p130 = scmp.le.s32.totalorder 1, %s8
      %p131 = scmp.lt.s32.totalorder %s8, 3
      %p132 = pnand %p130, %p131
      %p133 = pneg %p132
      // Predicated region
      $region9: #{rnn_model_forward.6} parent=5 // pred_check
        _
      $region10: #{rnn_model_forward.6} parent=5 // pred_check_branch
        %135 = sbr.rel (%p132) target = $region12
      $region11: #{rnn_model_forward.6} parent=5 // pred_region
        %s136 = ssub.s32 %s8, 1
      $region12: #{rnn_model_forward.6} parent=5 // pred_fallthru
        _
      %p137 = scmp.lt.s32.totalorder %s8, 2
      // Predicated region
      $region13: #{rnn_model_forward.6} parent=5 // pred_check
        %p138 = pneg %p137
      $region14: #{rnn_model_forward.6} parent=5 // pred_check_branch
        %140 = sbr.rel (%p138) target = $region16
      $region15: #{rnn_model_forward.6} parent=5 // pred_region
        // Predicated region
        $region17: #{rnn_model_forward.6} parent=15 // pred_check
          %p141 = pneg %p52
        $region18: #{rnn_model_forward.6} parent=15 // pred_check_branch
          %143 = sbr.rel (%p141) target = $region20
        $region19: #{rnn_model_forward.6} parent=15 // pred_region
          %s144 = sand.u32 %s42, 1
          %s145 = sand.u32 %s42, 1
          %s146 = smul.addr %s145, 16
          %s147 = scalar_lea.vmem [#allocation4], %s146
          %s148 = ssub.s32 1, %s15
          %s149 = smul.u32 %s148, %s16
          %s150 = ssub.s32 0, %s16
          %s151 = smul.u32 %s15, %s150
          %s152 = sadd.s32 %s149, %s151
          %s153 = smul.u32 8, %s152
          %s154 = smul.addr %s153, 2
          %s155 = sadd.s32 %s15, %s154
          %s156 = smul.addr %s155, 2
          %s157 = scalar_lea.vmem %s0, %s156
          // Predicated region
          $region21: #{rnn_model_forward.6} parent=19 // pred_check
            _
          $region22: #{rnn_model_forward.6} parent=19 // pred_check_branch
            %159 = sbr.rel (0) target = $region24
          $region23: #{rnn_model_forward.6} parent=19 // pred_region
            // Predicated region
            $region25: #{rnn_model_forward.6} parent=23 // pred_check
              _
            $region26: #{rnn_model_forward.6} parent=23 // pred_check_branch
              %161 = sbr.rel target = $region28
            $region27: #{rnn_model_forward.6} parent=23 // pred_region
              // Predicated region
              $region40: #{rnn_model_forward.6} parent=27 // pred_check
                _
              $region41: #{rnn_model_forward.6} parent=27 // pred_check_branch
                %190 = sbr.rel (0) target = $region43
              $region42: #{rnn_model_forward.6} parent=27 // pred_region
                loop: start=0, step=1, limit=1
                $region44: #{rnn_model_forward.6} parent=42 // loop_pre_header
                  _
                $region45: #{rnn_model_forward.6} parent=42 // loop_header
                  %s192 = sphi 0, %s196
                  %p193 = scmp.ge.s32.totalorder %s192, 1
                  %s197 = sphi %s157, %s157
                  %s198 = sphi %s147, %s147
                $region46: #{rnn_model_forward.6} parent=42 // loop_header_branch
                  %195 = sbr.rel (%p193) target = $region50
                $region47: #{rnn_model_forward.6} parent=42 // loop_body
                  _
                $region48: #{rnn_model_forward.6} parent=42 // loop_footer
                  %s196 = sadd.s32 1, %s192
                $region49: #{rnn_model_forward.6} parent=42 // loop_footer_branch
                  %191 = sbr.rel target = $region45
                $region50: #{rnn_model_forward.6} parent=42 // loop_exit
                  _
                loop: start=0, step=1, limit=1
                $region51: #{rnn_model_forward.6} parent=42 // loop_pre_header
                  _
                $region52: #{rnn_model_forward.6} parent=42 // loop_header
                  %s201 = sphi 0, %s205
                  %p202 = scmp.ge.s32.totalorder %s201, 1
                  %s206 = sphi %s157, %s157
                  %s207 = sphi %s147, %s147
                $region53: #{rnn_model_forward.6} parent=42 // loop_header_branch
                  %204 = sbr.rel (%p202) target = $region57
                $region54: #{rnn_model_forward.6} parent=42 // loop_body
                  %v208 = vld [vmem:[%s206] sm:$0x3]
                  %209 = vst [vmem:[%s207] sm:$0x3] %v208
                  %v210 = vld [vmem:[%s206 + $0x4] sm:$0x3]
                  %211 = vst [vmem:[%s207 + $0x2] sm:$0x3] %v210
                  %v212 = vld [vmem:[%s206 + $0x8] sm:$0x3]
                  %213 = vst [vmem:[%s207 + $0x4] sm:$0x3] %v212
                  %v214 = vld [vmem:[%s206 + $0xc] sm:$0x3]
                  %215 = vst [vmem:[%s207 + $0x6] sm:$0x3] %v214
                  %v216 = vld [vmem:[%s206 + $0x10] sm:$0x3]
                  %217 = vst [vmem:[%s207 + $0x8] sm:$0x3] %v216
                  %v218 = vld [vmem:[%s206 + $0x14] sm:$0x3]
                  %219 = vst [vmem:[%s207 + $0xa] sm:$0x3] %v218
                  %v220 = vld [vmem:[%s206 + $0x18] sm:$0x3]
                  %221 = vst [vmem:[%s207 + $0xc] sm:$0x3] %v220
                  %v222 = vld [vmem:[%s206 + $0x1c] sm:$0x3]
                  %223 = vst [vmem:[%s207 + $0xe] sm:$0x3] %v222
                $region55: #{rnn_model_forward.6} parent=42 // loop_footer
                  %s205 = sadd.s32 1, %s201
                $region56: #{rnn_model_forward.6} parent=42 // loop_footer_branch
                  %200 = sbr.rel target = $region52
                $region57: #{rnn_model_forward.6} parent=42 // loop_exit
                  _
              $region43: #{rnn_model_forward.6} parent=27 // pred_fallthru
                _
            $region28: #{rnn_model_forward.6} parent=23 // pred_fallthru
              _
            // Predicated region
            $region29: #{rnn_model_forward.6} parent=23 // pred_check
              _
            $region30: #{rnn_model_forward.6} parent=23 // pred_check_branch
              %163 = sbr.rel (0) target = $region32
            $region31: #{rnn_model_forward.6} parent=23 // pred_region
              loop: start=0, step=1, limit=1
              $region33: #{rnn_model_forward.6} parent=31 // loop_pre_header
                _
              $region34: #{rnn_model_forward.6} parent=31 // loop_header
                %s166 = sphi 0, %s170
                %p167 = scmp.ge.s32.totalorder %s166, 1
                %s171 = sphi %s157, %s157
                %s172 = sphi %s147, %s147
              $region35: #{rnn_model_forward.6} parent=31 // loop_header_branch
                %169 = sbr.rel (%p167) target = $region39
              $region36: #{rnn_model_forward.6} parent=31 // loop_body
                %v173 = vld [vmem:[%s171] sm:$0x3]
                %174 = vst [vmem:[%s172] sm:$0x3] %v173
                %v175 = vld [vmem:[%s171 + $0x4] sm:$0x3]
                %176 = vst [vmem:[%s172 + $0x2] sm:$0x3] %v175
                %v177 = vld [vmem:[%s171 + $0x8] sm:$0x3]
                %178 = vst [vmem:[%s172 + $0x4] sm:$0x3] %v177
                %v179 = vld [vmem:[%s171 + $0xc] sm:$0x3]
                %180 = vst [vmem:[%s172 + $0x6] sm:$0x3] %v179
                %v181 = vld [vmem:[%s171 + $0x10] sm:$0x3]
                %182 = vst [vmem:[%s172 + $0x8] sm:$0x3] %v181
                %v183 = vld [vmem:[%s171 + $0x14] sm:$0x3]
                %184 = vst [vmem:[%s172 + $0xa] sm:$0x3] %v183
                %v185 = vld [vmem:[%s171 + $0x18] sm:$0x3]
                %186 = vst [vmem:[%s172 + $0xc] sm:$0x3] %v185
                %v187 = vld [vmem:[%s171 + $0x1c] sm:$0x3]
                %188 = vst [vmem:[%s172 + $0xe] sm:$0x3] %v187
              $region37: #{rnn_model_forward.6} parent=31 // loop_footer
                %s170 = sadd.s32 1, %s166
              $region38: #{rnn_model_forward.6} parent=31 // loop_footer_branch
                %165 = sbr.rel target = $region34
              $region39: #{rnn_model_forward.6} parent=31 // loop_exit
                _
            $region32: #{rnn_model_forward.6} parent=23 // pred_fallthru
              _
          $region24: #{rnn_model_forward.6} parent=19 // pred_fallthru
            _
          %224 = vnop
        $region20: #{rnn_model_forward.6} parent=15 // pred_fallthru
          _
        // Predicated region
        $region58: #{rnn_model_forward.6} parent=15 // pred_check
          %p225 = pneg %p78
        $region59: #{rnn_model_forward.6} parent=15 // pred_check_branch
          %227 = sbr.rel (%p225) target = $region61
        $region60: #{rnn_model_forward.6} parent=15 // pred_region
          %p228 = scmp.lt.s32.totalorder %s15, 1
          %s229 = scalar_select %p228, %s15, 1
          %s230 = smul.addr %s229, 4
          %s231 = smul.addr %s230, 8
          %s232 = scalar_lea.vmem %s1, %s231
        $region61: #{rnn_model_forward.6} parent=15 // pred_fallthru
          _
      $region16: #{rnn_model_forward.6} parent=5 // pred_fallthru
        _
      %p233 = scmp.le.s32.totalorder 1, %s8
      %p234 = scmp.lt.s32.totalorder %s8, 3
      %p235 = pnand %p233, %p234
      %p236 = pneg %p235
      // Predicated region
      $region62: #{rnn_model_forward.6} parent=5 // pred_check
        _
      $region63: #{rnn_model_forward.6} parent=5 // pred_check_branch
        %238 = sbr.rel (%p235) target = $region65
      $region64: #{rnn_model_forward.6} parent=5 // pred_region
        %s239 = ssub.s32 %s8, 1
        %s240 = sand.u32 %s45, 1
        %s241 = sand.u32 %s45, 1
        %s242 = smul.addr %s241, 16
        %s243 = scalar_lea.vmem [#allocation4], %s242
        // Predicated region
        $region66: #{rnn_model_forward.6} parent=64 // pred_check
          %p244 = pneg %p58
        $region67: #{rnn_model_forward.6} parent=64 // pred_check_branch
          %246 = sbr.rel (%p244) target = $region69
        $region68: #{rnn_model_forward.6} parent=64 // pred_region
          _
        $region69: #{rnn_model_forward.6} parent=64 // pred_fallthru
          _
        %s247 = sand.u32 %s45, 1
        %s248 = sand.u32 %s45, 1
        %s249 = smul.addr %s248, 16
        %s250 = scalar_lea.vmem [#allocation4], %s249
        %p251 = pneg %p58
        %p252 = pneg %p55
        %p253 = scmp.lt.s32.totalorder %s17, 1
        %s254 = scalar_select %p253, %s17, 1
        %s255 = smul.addr %s254, 4
        %s256 = smul.addr %s255, 8
        %s257 = scalar_lea.vmem %s1, %s256
        %p258 = pneg %p84
        %p259 = pneg %p81
        %p260 = pneg %p122
        %p261 = pneg %p119
        %s262 = ssub.s32 1, %s17
        %s263 = smul.u32 %s262, %s18
        %s264 = ssub.s32 0, %s18
        %s265 = smul.u32 %s17, %s264
        %s266 = sadd.s32 %s263, %s265
        %s267 = smul.u32 8, %s266
        %p268 = scmp.lt.s32.totalorder %s17, 1
        %s269 = scalar_select %p268, %s17, 1
        %p270 = scmp.lt.s32.totalorder %s267, 7
        %s271 = scalar_select %p270, %s267, 7
        %s272 = smul.addr %s269, 8
        %s273 = sadd.s32 %s271, %s272
        %s274 = smul.addr %s273, 2
        %s275 = scalar_lea.vmem %s2, %s274
        %s276 = ssub.s32 1, %s17
        %s277 = smul.u32 %s276, %s18
        %s278 = ssub.s32 0, %s18
        %s279 = smul.u32 %s17, %s278
        %s280 = sadd.s32 %s277, %s279
        %s281 = smul.u32 8, %s280
        %p282 = scmp.lt.s32.totalorder %s17, 1
        %s283 = scalar_select %p282, %s17, 1
        %s284 = smul.addr %s283, 4
        %s285 = smul.addr %s284, 8
        %s286 = scalar_lea.vmem %s1, %s285
        %s287 = ssub.s32 1, %s17
        %s288 = smul.u32 %s287, %s18
        %s289 = ssub.s32 0, %s18
        %s290 = smul.u32 %s17, %s289
        %s291 = sadd.s32 %s288, %s290
        %s292 = smul.u32 8, %s291
        %p293 = scmp.lt.s32.totalorder %s17, 1
        %s294 = scalar_select %p293, %s17, 1
        %p295 = scmp.lt.s32.totalorder %s292, 7
        %s296 = scalar_select %p295, %s292, 7
        %s297 = smul.addr %s294, 8
        %s298 = sadd.s32 %s296, %s297
        %s299 = smul.addr %s298, 2
        %s300 = scalar_lea.vmem %s2, %s299
        %s301 = ssub.s32 1, %s17
        %s302 = smul.u32 %s301, %s18
        %s303 = ssub.s32 0, %s18
        %s304 = smul.u32 %s17, %s303
        %s305 = sadd.s32 %s302, %s304
        %s306 = smul.u32 8, %s305
        %p307 = scmp.eq.s32.totalorder %s18, 0
        // Predicated region
        $region70: #{rnn_model_forward.6} parent=64 // pred_check
          %p308 = pneg %p307
        $region71: #{rnn_model_forward.6} parent=64 // pred_check_branch
          %310 = sbr.rel (%p308) target = $region73
        $region72: #{rnn_model_forward.6} parent=64 // pred_region
          %vm311 = vcmask 254976
          %312 = vst.msk [vmem:[#allocation2] sm:$0x3] %vm311, 0.0
          %313 = vst.msk [vmem:[#allocation3] sm:$0x3] %vm311, 0.0
        $region73: #{rnn_model_forward.6} parent=64 // pred_fallthru
          _
        %v314 = vld [vmem:[%s286] sm:$0xff]
        %v315 = vld [vmem:[%s286 + $0x8] sm:$0xff]
        %v316 = vld [vmem:[%s286 + $0x10] sm:$0xff]
        %v317 = vld [vmem:[%s286 + $0x18] sm:$0xff]
        %v318 = vld [vmem:[#allocation2] sm:$0x3]
        %v319 = vld [vmem:[#allocation3] sm:$0x3]
        %s320 = smul.u32 %s17, 7
        %s321 = smul.u32 %s320, 2
        %s322 = scalar_lea.vmem %s243, %s321 [#allocation4]
        %v323 = vld [vmem:[%s322] sm:$0x3]
        %vm324 = vcmask 261120
        %v326 = vsel %vm324, %v318, 0
        %328 = vmatprep.subr.mxu0 0.0
        %329 = vmatpush1.msra.mxu0 %v314
        %330 = vmatprep.subr.mxu0 0.0
        %331 = vmatpush1.msra.mxu0 %v315
        %332 = vmatprep.subr.mxu0 0.0
        %333 = vmatpush1.msra.mxu0 %v316
        %334 = vmatprep.subr.mxu0 0.0
        %335 = vmatpush1.msra.mxu0 %v317
        %336 = vmatprep.subr.mxu0 0.0
        %337 = vmatpush1.msra.mxu0 0.0
        %338 = vmatprep.subr.mxu0 0.0
        %339 = vmatpush1.msra.mxu0 0.0
        %340 = vmatprep.subr.mxu0 0.0
        %341 = vmatpush1.msra.mxu0 0.0
        %342 = vmatprep.subr.mxu0 0.0
        %343 = vmatpush1.msra.mxu0 0.0
        %344 = vmatprep.subr.mxu0 0.0
        %345 = vmatpush1.msra.mxu0 0.0
        %346 = vmatprep.subr.mxu0 0.0
        %347 = vmatpush1.msra.mxu0 0.0
        %348 = vmatprep.subr.mxu0 0.0
        %349 = vmatpush1.msra.mxu0 0.0
        %350 = vmatprep.subr.mxu0 0.0
        %351 = vmatpush1.msra.mxu0 0.0
        %352 = vmatprep.subr.mxu0 0.0
        %353 = vmatpush1.msra.mxu0 0.0
        %354 = vmatprep.subr.mxu0 0.0
        %355 = vmatpush1.msra.mxu0 0.0
        %356 = vmatprep.subr.mxu0 0.0
        %357 = vmatpush1.msra.mxu0 0.0
        %358 = vmatprep.subr.mxu0 0.0
        %359 = vmatpush1.msra.mxu0 0.0
        %360 = vmatprep.subr.mxu0 0.0
        %361 = vmatpush1.msra.mxu0 0.0
        %362 = vmatprep.subr.mxu0 0.0
        %363 = vmatpush1.msra.mxu0 0.0
        %364 = vmatprep.subr.mxu0 0.0
        %365 = vmatpush1.msra.mxu0 0.0
        %366 = vmatprep.subr.mxu0 0.0
        %367 = vmatpush1.msra.mxu0 0.0
        %368 = vmatprep.subr.mxu0 0.0
        %369 = vmatpush1.msra.mxu0 0.0
        %370 = vmatprep.subr.mxu0 0.0
        %371 = vmatpush1.msra.mxu0 0.0
        %372 = vmatprep.subr.mxu0 0.0
        %373 = vmatpush1.msra.mxu0 0.0
        %374 = vmatprep.subr.mxu0 0.0
        %375 = vmatpush1.msra.mxu0 0.0
        %376 = vmatprep.subr.mxu0 0.0
        %377 = vmatpush1.msra.mxu0 0.0
        %378 = vmatprep.subr.mxu0 0.0
        %379 = vmatpush1.msra.mxu0 0.0
        %380 = vmatprep.subr.mxu0 0.0
        %381 = vmatpush1.msra.mxu0 0.0
        %382 = vmatprep.subr.mxu0 0.0
        %383 = vmatpush1.msra.mxu0 0.0
        %384 = vmatprep.subr.mxu0 0.0
        %385 = vmatpush1.msra.mxu0 0.0
        %386 = vmatprep.subr.mxu0 0.0
        %387 = vmatpush1.msra.mxu0 0.0
        %388 = vmatprep.subr.mxu0 0.0
        %389 = vmatpush1.msra.mxu0 0.0
        %390 = vmatprep.subr.mxu0 0.0
        %391 = vmatpush1.msra.mxu0 0.0
        %392 = vmatprep.mubr.f32.mxu0 0.0
        %393 = vmatmul.mubr.f32.gmra.mrb[0].mxu0 %v326
        %v394 = vpop.f32.mrb[0].mxu0
        %v395 = vadd.f32 0.0, %v394
        %v396 = vpop.f32.mrb[0].mxu0
        %397 = vdwg.mxu0
        %v398 = vadd.f32 %v323, %v395
        %v399 = vxor.u32 %v398, 2147483648
        %v400 = vmul.f32 %v399, 1.442695
        %v401 = vpow.pop %v400
        %v402 = vadd.f32 %v401, 1.0
        %v403 = vrcp.pop %v402
        %v404 = vmul.f32 1.0, %v403
        %v405 = vtanh.pop %v398
        %407 = vrot.lane.b32.xlu0 %v319, 32
        %v408 = vpop.permute.xlu0 %407
        %v410 = vmul.f32 %v404, %v408
        %412 = vrot.lane.b32.xlu0 %v405, 64
        %v413 = vpop.permute.xlu0 %412
        %v415 = vmul.f32 %v404, %v413
        %417 = vrot.lane.b32.xlu0 %v415, 32
        %v418 = vpop.permute.xlu0 %417
        %v420 = vadd.f32 %v410, %v418
        %v421 = vtanh.pop %v420
        %423 = vrot.lane.b32.xlu0 %v421, 64
        %v424 = vpop.permute.xlu0 %423
        %v426 = vmul.f32 %v404, %v424
        %428 = vrot.lane.b32.xlu0 %v426, 32
        %v429 = vpop.permute.xlu0 %428
        %s431 = scalar_lea.vmem %s300, %s321
        %vm432 = vcmask 254976
        %433 = vst.msk [vmem:[%s431] sm:$0x3] %vm432, %v429
        %s434 = ssub.s32 1, %s17
        %s435 = smul.u32 %s17, 6
        %s436 = sadd.s32 %s434, %s435
        %s437 = smul.u32 %s436, 2
        %s438 = scalar_lea.vmem %s243, %s437 [#allocation4]
        %v439 = vld [vmem:[%s438] sm:$0x3]
        %v440 = vsel %vm324, %v429, 0
        %442 = vmatprep.subr.mxu0 0.0
        %443 = vmatpush1.msra.mxu0 %v314
        %444 = vmatprep.subr.mxu0 0.0
        %445 = vmatpush1.msra.mxu0 %v315
        %446 = vmatprep.subr.mxu0 0.0
        %447 = vmatpush1.msra.mxu0 %v316
        %448 = vmatprep.subr.mxu0 0.0
        %449 = vmatpush1.msra.mxu0 %v317
        %450 = vmatprep.subr.mxu0 0.0
        %451 = vmatpush1.msra.mxu0 0.0
        %452 = vmatprep.subr.mxu0 0.0
        %453 = vmatpush1.msra.mxu0 0.0
        %454 = vmatprep.subr.mxu0 0.0
        %455 = vmatpush1.msra.mxu0 0.0
        %456 = vmatprep.subr.mxu0 0.0
        %457 = vmatpush1.msra.mxu0 0.0
        %458 = vmatprep.subr.mxu0 0.0
        %459 = vmatpush1.msra.mxu0 0.0
        %460 = vmatprep.subr.mxu0 0.0
        %461 = vmatpush1.msra.mxu0 0.0
        %462 = vmatprep.subr.mxu0 0.0
        %463 = vmatpush1.msra.mxu0 0.0
        %464 = vmatprep.subr.mxu0 0.0
        %465 = vmatpush1.msra.mxu0 0.0
        %466 = vmatprep.subr.mxu0 0.0
        %467 = vmatpush1.msra.mxu0 0.0
        %468 = vmatprep.subr.mxu0 0.0
        %469 = vmatpush1.msra.mxu0 0.0
        %470 = vmatprep.subr.mxu0 0.0
        %471 = vmatpush1.msra.mxu0 0.0
        %472 = vmatprep.subr.mxu0 0.0
        %473 = vmatpush1.msra.mxu0 0.0
        %474 = vmatprep.subr.mxu0 0.0
        %475 = vmatpush1.msra.mxu0 0.0
        %476 = vmatprep.subr.mxu0 0.0
        %477 = vmatpush1.msra.mxu0 0.0
        %478 = vmatprep.subr.mxu0 0.0
        %479 = vmatpush1.msra.mxu0 0.0
        %480 = vmatprep.subr.mxu0 0.0
        %481 = vmatpush1.msra.mxu0 0.0
        %482 = vmatprep.subr.mxu0 0.0
        %483 = vmatpush1.msra.mxu0 0.0
        %484 = vmatprep.subr.mxu0 0.0
        %485 = vmatpush1.msra.mxu0 0.0
        %486 = vmatprep.subr.mxu0 0.0
        %487 = vmatpush1.msra.mxu0 0.0
        %488 = vmatprep.subr.mxu0 0.0
        %489 = vmatpush1.msra.mxu0 0.0
        %490 = vmatprep.subr.mxu0 0.0
        %491 = vmatpush1.msra.mxu0 0.0
        %492 = vmatprep.subr.mxu0 0.0
        %493 = vmatpush1.msra.mxu0 0.0
        %494 = vmatprep.subr.mxu0 0.0
        %495 = vmatpush1.msra.mxu0 0.0
        %496 = vmatprep.subr.mxu0 0.0
        %497 = vmatpush1.msra.mxu0 0.0
        %498 = vmatprep.subr.mxu0 0.0
        %499 = vmatpush1.msra.mxu0 0.0
        %500 = vmatprep.subr.mxu0 0.0
        %501 = vmatpush1.msra.mxu0 0.0
        %502 = vmatprep.subr.mxu0 0.0
        %503 = vmatpush1.msra.mxu0 0.0
        %504 = vmatprep.subr.mxu0 0.0
        %505 = vmatpush1.msra.mxu0 0.0
        %506 = vmatprep.mubr.f32.mxu0 0.0
        %507 = vmatmul.mubr.f32.gmra.mrb[0].mxu0 %v440
        %v508 = vpop.f32.mrb[0].mxu0
        %v509 = vadd.f32 0.0, %v508
        %v510 = vpop.f32.mrb[0].mxu0
        %511 = vdwg.mxu0
        %v512 = vadd.f32 %v439, %v509
        %v513 = vxor.u32 %v512, 2147483648
        %v514 = vmul.f32 %v513, 1.442695
        %v515 = vpow.pop %v514
        %v516 = vadd.f32 %v515, 1.0
        %v517 = vrcp.pop %v516
        %v518 = vmul.f32 1.0, %v517
        %v519 = vtanh.pop %v512
        %v520 = vmul.f32 %v518, %v420
        %522 = vrot.lane.b32.xlu0 %v519, 64
        %v523 = vpop.permute.xlu0 %522
        %v525 = vmul.f32 %v518, %v523
        %527 = vrot.lane.b32.xlu0 %v525, 32
        %v528 = vpop.permute.xlu0 %527
        %v530 = vadd.f32 %v520, %v528
        %v531 = vtanh.pop %v530
        %533 = vrot.lane.b32.xlu0 %v531, 64
        %v534 = vpop.permute.xlu0 %533
        %v536 = vmul.f32 %v518, %v534
        %538 = vrot.lane.b32.xlu0 %v536, 32
        %v539 = vpop.permute.xlu0 %538
        %s541 = scalar_lea.vmem %s300, %s437
        %542 = vst.msk [vmem:[%s541] sm:$0x3] %vm432, %v539
        %s543 = smul.u32 %s434, 2
        %s544 = smul.u32 %s17, 5
        %s545 = sadd.s32 %s543, %s544
        %s546 = smul.u32 %s545, 2
        %s547 = scalar_lea.vmem %s243, %s546 [#allocation4]
        %v548 = vld [vmem:[%s547] sm:$0x3]
        %v549 = vsel %vm324, %v539, 0
        %551 = vmatprep.subr.mxu0 0.0
        %552 = vmatpush1.msra.mxu0 %v314
        %553 = vmatprep.subr.mxu0 0.0
        %554 = vmatpush1.msra.mxu0 %v315
        %555 = vmatprep.subr.mxu0 0.0
        %556 = vmatpush1.msra.mxu0 %v316
        %557 = vmatprep.subr.mxu0 0.0
        %558 = vmatpush1.msra.mxu0 %v317
        %559 = vmatprep.subr.mxu0 0.0
        %560 = vmatpush1.msra.mxu0 0.0
        %561 = vmatprep.subr.mxu0 0.0
        %562 = vmatpush1.msra.mxu0 0.0
        %563 = vmatprep.subr.mxu0 0.0
        %564 = vmatpush1.msra.mxu0 0.0
        %565 = vmatprep.subr.mxu0 0.0
        %566 = vmatpush1.msra.mxu0 0.0
        %567 = vmatprep.subr.mxu0 0.0
        %568 = vmatpush1.msra.mxu0 0.0
        %569 = vmatprep.subr.mxu0 0.0
        %570 = vmatpush1.msra.mxu0 0.0
        %571 = vmatprep.subr.mxu0 0.0
        %572 = vmatpush1.msra.mxu0 0.0
        %573 = vmatprep.subr.mxu0 0.0
        %574 = vmatpush1.msra.mxu0 0.0
        %575 = vmatprep.subr.mxu0 0.0
        %576 = vmatpush1.msra.mxu0 0.0
        %577 = vmatprep.subr.mxu0 0.0
        %578 = vmatpush1.msra.mxu0 0.0
        %579 = vmatprep.subr.mxu0 0.0
        %580 = vmatpush1.msra.mxu0 0.0
        %581 = vmatprep.subr.mxu0 0.0
        %582 = vmatpush1.msra.mxu0 0.0
        %583 = vmatprep.subr.mxu0 0.0
        %584 = vmatpush1.msra.mxu0 0.0
        %585 = vmatprep.subr.mxu0 0.0
        %586 = vmatpush1.msra.mxu0 0.0
        %587 = vmatprep.subr.mxu0 0.0
        %588 = vmatpush1.msra.mxu0 0.0
        %589 = vmatprep.subr.mxu0 0.0
        %590 = vmatpush1.msra.mxu0 0.0
        %591 = vmatprep.subr.mxu0 0.0
        %592 = vmatpush1.msra.mxu0 0.0
        %593 = vmatprep.subr.mxu0 0.0
        %594 = vmatpush1.msra.mxu0 0.0
        %595 = vmatprep.subr.mxu0 0.0
        %596 = vmatpush1.msra.mxu0 0.0
        %597 = vmatprep.subr.mxu0 0.0
        %598 = vmatpush1.msra.mxu0 0.0
        %599 = vmatprep.subr.mxu0 0.0
        %600 = vmatpush1.msra.mxu0 0.0
        %601 = vmatprep.subr.mxu0 0.0
        %602 = vmatpush1.msra.mxu0 0.0
        %603 = vmatprep.subr.mxu0 0.0
        %604 = vmatpush1.msra.mxu0 0.0
        %605 = vmatprep.subr.mxu0 0.0
        %606 = vmatpush1.msra.mxu0 0.0
        %607 = vmatprep.subr.mxu0 0.0
        %608 = vmatpush1.msra.mxu0 0.0
        %609 = vmatprep.subr.mxu0 0.0
        %610 = vmatpush1.msra.mxu0 0.0
        %611 = vmatprep.subr.mxu0 0.0
        %612 = vmatpush1.msra.mxu0 0.0
        %613 = vmatprep.subr.mxu0 0.0
        %614 = vmatpush1.msra.mxu0 0.0
        %615 = vmatprep.mubr.f32.mxu0 0.0
        %616 = vmatmul.mubr.f32.gmra.mrb[0].mxu0 %v549
        %v617 = vpop.f32.mrb[0].mxu0
        %v618 = vadd.f32 0.0, %v617
        %v619 = vpop.f32.mrb[0].mxu0
        %620 = vdwg.mxu0
        %v621 = vadd.f32 %v548, %v618
        %v622 = vxor.u32 %v621, 2147483648
        %v623 = vmul.f32 %v622, 1.442695
        %v624 = vpow.pop %v623
        %v625 = vadd.f32 %v624, 1.0
        %v626 = vrcp.pop %v625
        %v627 = vmul.f32 1.0, %v626
        %v628 = vtanh.pop %v621
        %v629 = vmul.f32 %v627, %v530
        %631 = vrot.lane.b32.xlu0 %v628, 64
        %v632 = vpop.permute.xlu0 %631
        %v634 = vmul.f32 %v627, %v632
        %636 = vrot.lane.b32.xlu0 %v634, 32
        %v637 = vpop.permute.xlu0 %636
        %v639 = vadd.f32 %v629, %v637
        %v640 = vtanh.pop %v639
        %642 = vrot.lane.b32.xlu0 %v640, 64
        %v643 = vpop.permute.xlu0 %642
        %v645 = vmul.f32 %v627, %v643
        %647 = vrot.lane.b32.xlu0 %v645, 32
        %v648 = vpop.permute.xlu0 %647
        %s650 = scalar_lea.vmem %s300, %s546
        %651 = vst.msk [vmem:[%s650] sm:$0x3] %vm432, %v648
        %s652 = smul.u32 %s434, 3
        %s653 = smul.u32 %s17, 4
        %s654 = sadd.s32 %s652, %s653
        %s655 = smul.u32 %s654, 2
        %s656 = scalar_lea.vmem %s243, %s655 [#allocation4]
        %v657 = vld [vmem:[%s656] sm:$0x3]
        %v658 = vsel %vm324, %v648, 0
        %660 = vmatprep.subr.mxu0 0.0
        %661 = vmatpush1.msra.mxu0 %v314
        %662 = vmatprep.subr.mxu0 0.0
        %663 = vmatpush1.msra.mxu0 %v315
        %664 = vmatprep.subr.mxu0 0.0
        %665 = vmatpush1.msra.mxu0 %v316
        %666 = vmatprep.subr.mxu0 0.0
        %667 = vmatpush1.msra.mxu0 %v317
        %668 = vmatprep.subr.mxu0 0.0
        %669 = vmatpush1.msra.mxu0 0.0
        %670 = vmatprep.subr.mxu0 0.0
        %671 = vmatpush1.msra.mxu0 0.0
        %672 = vmatprep.subr.mxu0 0.0
        %673 = vmatpush1.msra.mxu0 0.0
        %674 = vmatprep.subr.mxu0 0.0
        %675 = vmatpush1.msra.mxu0 0.0
        %676 = vmatprep.subr.mxu0 0.0
        %677 = vmatpush1.msra.mxu0 0.0
        %678 = vmatprep.subr.mxu0 0.0
        %679 = vmatpush1.msra.mxu0 0.0
        %680 = vmatprep.subr.mxu0 0.0
        %681 = vmatpush1.msra.mxu0 0.0
        %682 = vmatprep.subr.mxu0 0.0
        %683 = vmatpush1.msra.mxu0 0.0
        %684 = vmatprep.subr.mxu0 0.0
        %685 = vmatpush1.msra.mxu0 0.0
        %686 = vmatprep.subr.mxu0 0.0
        %687 = vmatpush1.msra.mxu0 0.0
        %688 = vmatprep.subr.mxu0 0.0
        %689 = vmatpush1.msra.mxu0 0.0
        %690 = vmatprep.subr.mxu0 0.0
        %691 = vmatpush1.msra.mxu0 0.0
        %692 = vmatprep.subr.mxu0 0.0
        %693 = vmatpush1.msra.mxu0 0.0
        %694 = vmatprep.subr.mxu0 0.0
        %695 = vmatpush1.msra.mxu0 0.0
        %696 = vmatprep.subr.mxu0 0.0
        %697 = vmatpush1.msra.mxu0 0.0
        %698 = vmatprep.subr.mxu0 0.0
        %699 = vmatpush1.msra.mxu0 0.0
        %700 = vmatprep.subr.mxu0 0.0
        %701 = vmatpush1.msra.mxu0 0.0
        %702 = vmatprep.subr.mxu0 0.0
        %703 = vmatpush1.msra.mxu0 0.0
        %704 = vmatprep.subr.mxu0 0.0
        %705 = vmatpush1.msra.mxu0 0.0
        %706 = vmatprep.subr.mxu0 0.0
        %707 = vmatpush1.msra.mxu0 0.0
        %708 = vmatprep.subr.mxu0 0.0
        %709 = vmatpush1.msra.mxu0 0.0
        %710 = vmatprep.subr.mxu0 0.0
        %711 = vmatpush1.msra.mxu0 0.0
        %712 = vmatprep.subr.mxu0 0.0
        %713 = vmatpush1.msra.mxu0 0.0
        %714 = vmatprep.subr.mxu0 0.0
        %715 = vmatpush1.msra.mxu0 0.0
        %716 = vmatprep.subr.mxu0 0.0
        %717 = vmatpush1.msra.mxu0 0.0
        %718 = vmatprep.subr.mxu0 0.0
        %719 = vmatpush1.msra.mxu0 0.0
        %720 = vmatprep.subr.mxu0 0.0
        %721 = vmatpush1.msra.mxu0 0.0
        %722 = vmatprep.subr.mxu0 0.0
        %723 = vmatpush1.msra.mxu0 0.0
        %724 = vmatprep.mubr.f32.mxu0 0.0
        %725 = vmatmul.mubr.f32.gmra.mrb[0].mxu0 %v658
        %v726 = vpop.f32.mrb[0].mxu0
        %v727 = vadd.f32 0.0, %v726
        %v728 = vpop.f32.mrb[0].mxu0
        %729 = vdwg.mxu0
        %v730 = vadd.f32 %v657, %v727
        %v731 = vxor.u32 %v730, 2147483648
        %v732 = vmul.f32 %v731, 1.442695
        %v733 = vpow.pop %v732
        %v734 = vadd.f32 %v733, 1.0
        %v735 = vrcp.pop %v734
        %v736 = vmul.f32 1.0, %v735
        %v737 = vtanh.pop %v730
        %v738 = vmul.f32 %v736, %v639
        %740 = vrot.lane.b32.xlu0 %v737, 64
        %v741 = vpop.permute.xlu0 %740
        %v743 = vmul.f32 %v736, %v741
        %745 = vrot.lane.b32.xlu0 %v743, 32
        %v746 = vpop.permute.xlu0 %745
        %v748 = vadd.f32 %v738, %v746
        %v749 = vtanh.pop %v748
        %751 = vrot.lane.b32.xlu0 %v749, 64
        %v752 = vpop.permute.xlu0 %751
        %v754 = vmul.f32 %v736, %v752
        %756 = vrot.lane.b32.xlu0 %v754, 32
        %v757 = vpop.permute.xlu0 %756
        %s759 = scalar_lea.vmem %s300, %s655
        %760 = vst.msk [vmem:[%s759] sm:$0x3] %vm432, %v757
        %s761 = smul.u32 %s434, 4
        %s762 = smul.u32 %s17, 3
        %s763 = sadd.s32 %s761, %s762
        %s764 = smul.u32 %s763, 2
        %s765 = scalar_lea.vmem %s243, %s764 [#allocation4]
        %v766 = vld [vmem:[%s765] sm:$0x3]
        %v767 = vsel %vm324, %v757, 0
        %769 = vmatprep.subr.mxu0 0.0
        %770 = vmatpush1.msra.mxu0 %v314
        %771 = vmatprep.subr.mxu0 0.0
        %772 = vmatpush1.msra.mxu0 %v315
        %773 = vmatprep.subr.mxu0 0.0
        %774 = vmatpush1.msra.mxu0 %v316
        %775 = vmatprep.subr.mxu0 0.0
        %776 = vmatpush1.msra.mxu0 %v317
        %777 = vmatprep.subr.mxu0 0.0
        %778 = vmatpush1.msra.mxu0 0.0
        %779 = vmatprep.subr.mxu0 0.0
        %780 = vmatpush1.msra.mxu0 0.0
        %781 = vmatprep.subr.mxu0 0.0
        %782 = vmatpush1.msra.mxu0 0.0
        %783 = vmatprep.subr.mxu0 0.0
        %784 = vmatpush1.msra.mxu0 0.0
        %785 = vmatprep.subr.mxu0 0.0
        %786 = vmatpush1.msra.mxu0 0.0
        %787 = vmatprep.subr.mxu0 0.0
        %788 = vmatpush1.msra.mxu0 0.0
        %789 = vmatprep.subr.mxu0 0.0
        %790 = vmatpush1.msra.mxu0 0.0
        %791 = vmatprep.subr.mxu0 0.0
        %792 = vmatpush1.msra.mxu0 0.0
        %793 = vmatprep.subr.mxu0 0.0
        %794 = vmatpush1.msra.mxu0 0.0
        %795 = vmatprep.subr.mxu0 0.0
        %796 = vmatpush1.msra.mxu0 0.0
        %797 = vmatprep.subr.mxu0 0.0
        %798 = vmatpush1.msra.mxu0 0.0
        %799 = vmatprep.subr.mxu0 0.0
        %800 = vmatpush1.msra.mxu0 0.0
        %801 = vmatprep.subr.mxu0 0.0
        %802 = vmatpush1.msra.mxu0 0.0
        %803 = vmatprep.subr.mxu0 0.0
        %804 = vmatpush1.msra.mxu0 0.0
        %805 = vmatprep.subr.mxu0 0.0
        %806 = vmatpush1.msra.mxu0 0.0
        %807 = vmatprep.subr.mxu0 0.0
        %808 = vmatpush1.msra.mxu0 0.0
        %809 = vmatprep.subr.mxu0 0.0
        %810 = vmatpush1.msra.mxu0 0.0
        %811 = vmatprep.subr.mxu0 0.0
        %812 = vmatpush1.msra.mxu0 0.0
        %813 = vmatprep.subr.mxu0 0.0
        %814 = vmatpush1.msra.mxu0 0.0
        %815 = vmatprep.subr.mxu0 0.0
        %816 = vmatpush1.msra.mxu0 0.0
        %817 = vmatprep.subr.mxu0 0.0
        %818 = vmatpush1.msra.mxu0 0.0
        %819 = vmatprep.subr.mxu0 0.0
        %820 = vmatpush1.msra.mxu0 0.0
        %821 = vmatprep.subr.mxu0 0.0
        %822 = vmatpush1.msra.mxu0 0.0
        %823 = vmatprep.subr.mxu0 0.0
        %824 = vmatpush1.msra.mxu0 0.0
        %825 = vmatprep.subr.mxu0 0.0
        %826 = vmatpush1.msra.mxu0 0.0
        %827 = vmatprep.subr.mxu0 0.0
        %828 = vmatpush1.msra.mxu0 0.0
        %829 = vmatprep.subr.mxu0 0.0
        %830 = vmatpush1.msra.mxu0 0.0
        %831 = vmatprep.subr.mxu0 0.0
        %832 = vmatpush1.msra.mxu0 0.0
        %833 = vmatprep.mubr.f32.mxu0 0.0
        %834 = vmatmul.mubr.f32.gmra.mrb[0].mxu0 %v767
        %v835 = vpop.f32.mrb[0].mxu0
        %v836 = vadd.f32 0.0, %v835
        %v837 = vpop.f32.mrb[0].mxu0
        %838 = vdwg.mxu0
        %v839 = vadd.f32 %v766, %v836
        %v840 = vxor.u32 %v839, 2147483648
        %v841 = vmul.f32 %v840, 1.442695
        %v842 = vpow.pop %v841
        %v843 = vadd.f32 %v842, 1.0
        %v844 = vrcp.pop %v843
        %v845 = vmul.f32 1.0, %v844
        %v846 = vtanh.pop %v839
        %v847 = vmul.f32 %v845, %v748
        %849 = vrot.lane.b32.xlu0 %v846, 64
        %v850 = vpop.permute.xlu0 %849
        %v852 = vmul.f32 %v845, %v850
        %854 = vrot.lane.b32.xlu0 %v852, 32
        %v855 = vpop.permute.xlu0 %854
        %v857 = vadd.f32 %v847, %v855
        %v858 = vtanh.pop %v857
        %860 = vrot.lane.b32.xlu0 %v858, 64
        %v861 = vpop.permute.xlu0 %860
        %v863 = vmul.f32 %v845, %v861
        %865 = vrot.lane.b32.xlu0 %v863, 32
        %v866 = vpop.permute.xlu0 %865
        %s868 = scalar_lea.vmem %s300, %s764
        %869 = vst.msk [vmem:[%s868] sm:$0x3] %vm432, %v866
        %s870 = smul.u32 %s434, 5
        %s871 = smul.u32 %s17, 2
        %s872 = sadd.s32 %s870, %s871
        %s873 = smul.u32 %s872, 2
        %s874 = scalar_lea.vmem %s243, %s873 [#allocation4]
        %v875 = vld [vmem:[%s874] sm:$0x3]
        %v876 = vsel %vm324, %v866, 0
        %878 = vmatprep.subr.mxu0 0.0
        %879 = vmatpush1.msra.mxu0 %v314
        %880 = vmatprep.subr.mxu0 0.0
        %881 = vmatpush1.msra.mxu0 %v315
        %882 = vmatprep.subr.mxu0 0.0
        %883 = vmatpush1.msra.mxu0 %v316
        %884 = vmatprep.subr.mxu0 0.0
        %885 = vmatpush1.msra.mxu0 %v317
        %886 = vmatprep.subr.mxu0 0.0
        %887 = vmatpush1.msra.mxu0 0.0
        %888 = vmatprep.subr.mxu0 0.0
        %889 = vmatpush1.msra.mxu0 0.0
        %890 = vmatprep.subr.mxu0 0.0
        %891 = vmatpush1.msra.mxu0 0.0
        %892 = vmatprep.subr.mxu0 0.0
        %893 = vmatpush1.msra.mxu0 0.0
        %894 = vmatprep.subr.mxu0 0.0
        %895 = vmatpush1.msra.mxu0 0.0
        %896 = vmatprep.subr.mxu0 0.0
        %897 = vmatpush1.msra.mxu0 0.0
        %898 = vmatprep.subr.mxu0 0.0
        %899 = vmatpush1.msra.mxu0 0.0
        %900 = vmatprep.subr.mxu0 0.0
        %901 = vmatpush1.msra.mxu0 0.0
        %902 = vmatprep.subr.mxu0 0.0
        %903 = vmatpush1.msra.mxu0 0.0
        %904 = vmatprep.subr.mxu0 0.0
        %905 = vmatpush1.msra.mxu0 0.0
        %906 = vmatprep.subr.mxu0 0.0
        %907 = vmatpush1.msra.mxu0 0.0
        %908 = vmatprep.subr.mxu0 0.0
        %909 = vmatpush1.msra.mxu0 0.0
        %910 = vmatprep.subr.mxu0 0.0
        %911 = vmatpush1.msra.mxu0 0.0
        %912 = vmatprep.subr.mxu0 0.0
        %913 = vmatpush1.msra.mxu0 0.0
        %914 = vmatprep.subr.mxu0 0.0
        %915 = vmatpush1.msra.mxu0 0.0
        %916 = vmatprep.subr.mxu0 0.0
        %917 = vmatpush1.msra.mxu0 0.0
        %918 = vmatprep.subr.mxu0 0.0
        %919 = vmatpush1.msra.mxu0 0.0
        %920 = vmatprep.subr.mxu0 0.0
        %921 = vmatpush1.msra.mxu0 0.0
        %922 = vmatprep.subr.mxu0 0.0
        %923 = vmatpush1.msra.mxu0 0.0
        %924 = vmatprep.subr.mxu0 0.0
        %925 = vmatpush1.msra.mxu0 0.0
        %926 = vmatprep.subr.mxu0 0.0
        %927 = vmatpush1.msra.mxu0 0.0
        %928 = vmatprep.subr.mxu0 0.0
        %929 = vmatpush1.msra.mxu0 0.0
        %930 = vmatprep.subr.mxu0 0.0
        %931 = vmatpush1.msra.mxu0 0.0
        %932 = vmatprep.subr.mxu0 0.0
        %933 = vmatpush1.msra.mxu0 0.0
        %934 = vmatprep.subr.mxu0 0.0
        %935 = vmatpush1.msra.mxu0 0.0
        %936 = vmatprep.subr.mxu0 0.0
        %937 = vmatpush1.msra.mxu0 0.0
        %938 = vmatprep.subr.mxu0 0.0
        %939 = vmatpush1.msra.mxu0 0.0
        %940 = vmatprep.subr.mxu0 0.0
        %941 = vmatpush1.msra.mxu0 0.0
        %942 = vmatprep.mubr.f32.mxu0 0.0
        %943 = vmatmul.mubr.f32.gmra.mrb[0].mxu0 %v876
        %v944 = vpop.f32.mrb[0].mxu0
        %v945 = vadd.f32 0.0, %v944
        %v946 = vpop.f32.mrb[0].mxu0
        %947 = vdwg.mxu0
        %v948 = vadd.f32 %v875, %v945
        %v949 = vxor.u32 %v948, 2147483648
        %v950 = vmul.f32 %v949, 1.442695
        %v951 = vpow.pop %v950
        %v952 = vadd.f32 %v951, 1.0
        %v953 = vrcp.pop %v952
        %v954 = vmul.f32 1.0, %v953
        %v955 = vtanh.pop %v948
        %v956 = vmul.f32 %v954, %v857
        %958 = vrot.lane.b32.xlu0 %v955, 64
        %v959 = vpop.permute.xlu0 %958
        %v961 = vmul.f32 %v954, %v959
        %963 = vrot.lane.b32.xlu0 %v961, 32
        %v964 = vpop.permute.xlu0 %963
        %v966 = vadd.f32 %v956, %v964
        %v967 = vtanh.pop %v966
        %969 = vrot.lane.b32.xlu0 %v967, 64
        %v970 = vpop.permute.xlu0 %969
        %v972 = vmul.f32 %v954, %v970
        %974 = vrot.lane.b32.xlu0 %v972, 32
        %v975 = vpop.permute.xlu0 %974
        %s977 = scalar_lea.vmem %s300, %s873
        %978 = vst.msk [vmem:[%s977] sm:$0x3] %vm432, %v975
        %s979 = smul.u32 %s434, 6
        %s980 = sadd.s32 %s979, %s17
        %s981 = smul.u32 %s980, 2
        %s982 = scalar_lea.vmem %s243, %s981 [#allocation4]
        %v983 = vld [vmem:[%s982] sm:$0x3]
        %v984 = vsel %vm324, %v975, 0
        %986 = vmatprep.subr.mxu0 0.0
        %987 = vmatpush1.msra.mxu0 %v314
        %988 = vmatprep.subr.mxu0 0.0
        %989 = vmatpush1.msra.mxu0 %v315
        %990 = vmatprep.subr.mxu0 0.0
        %991 = vmatpush1.msra.mxu0 %v316
        %992 = vmatprep.subr.mxu0 0.0
        %993 = vmatpush1.msra.mxu0 %v317
        %994 = vmatprep.subr.mxu0 0.0
        %995 = vmatpush1.msra.mxu0 0.0
        %996 = vmatprep.subr.mxu0 0.0
        %997 = vmatpush1.msra.mxu0 0.0
        %998 = vmatprep.subr.mxu0 0.0
        %999 = vmatpush1.msra.mxu0 0.0
        %1000 = vmatprep.subr.mxu0 0.0
        %1001 = vmatpush1.msra.mxu0 0.0
        %1002 = vmatprep.subr.mxu0 0.0
        %1003 = vmatpush1.msra.mxu0 0.0
        %1004 = vmatprep.subr.mxu0 0.0
        %1005 = vmatpush1.msra.mxu0 0.0
        %1006 = vmatprep.subr.mxu0 0.0
        %1007 = vmatpush1.msra.mxu0 0.0
        %1008 = vmatprep.subr.mxu0 0.0
        %1009 = vmatpush1.msra.mxu0 0.0
        %1010 = vmatprep.subr.mxu0 0.0
        %1011 = vmatpush1.msra.mxu0 0.0
        %1012 = vmatprep.subr.mxu0 0.0
        %1013 = vmatpush1.msra.mxu0 0.0
        %1014 = vmatprep.subr.mxu0 0.0
        %1015 = vmatpush1.msra.mxu0 0.0
        %1016 = vmatprep.subr.mxu0 0.0
        %1017 = vmatpush1.msra.mxu0 0.0
        %1018 = vmatprep.subr.mxu0 0.0
        %1019 = vmatpush1.msra.mxu0 0.0
        %1020 = vmatprep.subr.mxu0 0.0
        %1021 = vmatpush1.msra.mxu0 0.0
        %1022 = vmatprep.subr.mxu0 0.0
        %1023 = vmatpush1.msra.mxu0 0.0
        %1024 = vmatprep.subr.mxu0 0.0
        %1025 = vmatpush1.msra.mxu0 0.0
        %1026 = vmatprep.subr.mxu0 0.0
        %1027 = vmatpush1.msra.mxu0 0.0
        %1028 = vmatprep.subr.mxu0 0.0
        %1029 = vmatpush1.msra.mxu0 0.0
        %1030 = vmatprep.subr.mxu0 0.0
        %1031 = vmatpush1.msra.mxu0 0.0
        %1032 = vmatprep.subr.mxu0 0.0
        %1033 = vmatpush1.msra.mxu0 0.0
        %1034 = vmatprep.subr.mxu0 0.0
        %1035 = vmatpush1.msra.mxu0 0.0
        %1036 = vmatprep.subr.mxu0 0.0
        %1037 = vmatpush1.msra.mxu0 0.0
        %1038 = vmatprep.subr.mxu0 0.0
        %1039 = vmatpush1.msra.mxu0 0.0
        %1040 = vmatprep.subr.mxu0 0.0
        %1041 = vmatpush1.msra.mxu0 0.0
        %1042 = vmatprep.subr.mxu0 0.0
        %1043 = vmatpush1.msra.mxu0 0.0
        %1044 = vmatprep.subr.mxu0 0.0
        %1045 = vmatpush1.msra.mxu0 0.0
        %1046 = vmatprep.subr.mxu0 0.0
        %1047 = vmatpush1.msra.mxu0 0.0
        %1048 = vmatprep.subr.mxu0 0.0
        %1049 = vmatpush1.msra.mxu0 0.0
        %1050 = vmatprep.mubr.f32.mxu0 0.0
        %1051 = vmatmul.mubr.f32.gmra.mrb[0].mxu0 %v984
        %v1052 = vpop.f32.mrb[0].mxu0
        %v1053 = vadd.f32 0.0, %v1052
        %v1054 = vpop.f32.mrb[0].mxu0
        %1055 = vdwg.mxu0
        %v1056 = vadd.f32 %v983, %v1053
        %v1057 = vxor.u32 %v1056, 2147483648
        %v1058 = vmul.f32 %v1057, 1.442695
        %v1059 = vpow.pop %v1058
        %v1060 = vadd.f32 %v1059, 1.0
        %v1061 = vrcp.pop %v1060
        %v1062 = vmul.f32 1.0, %v1061
        %v1063 = vtanh.pop %v1056
        %v1064 = vmul.f32 %v1062, %v966
        %1066 = vrot.lane.b32.xlu0 %v1063, 64
        %v1067 = vpop.permute.xlu0 %1066
        %v1069 = vmul.f32 %v1062, %v1067
        %1071 = vrot.lane.b32.xlu0 %v1069, 32
        %v1072 = vpop.permute.xlu0 %1071
        %v1074 = vadd.f32 %v1064, %v1072
        %v1075 = vtanh.pop %v1074
        %1077 = vrot.lane.b32.xlu0 %v1075, 64
        %v1078 = vpop.permute.xlu0 %1077
        %v1080 = vmul.f32 %v1062, %v1078
        %1082 = vrot.lane.b32.xlu0 %v1080, 32
        %v1083 = vpop.permute.xlu0 %1082
        %s1085 = scalar_lea.vmem %s300, %s981
        %1086 = vst.msk [vmem:[%s1085] sm:$0x3] %vm432, %v1083
        %s1087 = smul.u32 %s434, 7
        %s1088 = smul.u32 %s1087, 2
        %s1089 = scalar_lea.vmem %s243, %s1088 [#allocation4]
        %v1090 = vld [vmem:[%s1089] sm:$0x3]
        %v1091 = vsel %vm324, %v1083, 0
        %1093 = vmatprep.subr.mxu0 0.0
        %1094 = vmatpush1.msra.mxu0 %v314
        %1095 = vmatprep.subr.mxu0 0.0
        %1096 = vmatpush1.msra.mxu0 %v315
        %1097 = vmatprep.subr.mxu0 0.0
        %1098 = vmatpush1.msra.mxu0 %v316
        %1099 = vmatprep.subr.mxu0 0.0
        %1100 = vmatpush1.msra.mxu0 %v317
        %1101 = vmatprep.subr.mxu0 0.0
        %1102 = vmatpush1.msra.mxu0 0.0
        %1103 = vmatprep.subr.mxu0 0.0
        %1104 = vmatpush1.msra.mxu0 0.0
        %1105 = vmatprep.subr.mxu0 0.0
        %1106 = vmatpush1.msra.mxu0 0.0
        %1107 = vmatprep.subr.mxu0 0.0
        %1108 = vmatpush1.msra.mxu0 0.0
        %1109 = vmatprep.subr.mxu0 0.0
        %1110 = vmatpush1.msra.mxu0 0.0
        %1111 = vmatprep.subr.mxu0 0.0
        %1112 = vmatpush1.msra.mxu0 0.0
        %1113 = vmatprep.subr.mxu0 0.0
        %1114 = vmatpush1.msra.mxu0 0.0
        %1115 = vmatprep.subr.mxu0 0.0
        %1116 = vmatpush1.msra.mxu0 0.0
        %1117 = vmatprep.subr.mxu0 0.0
        %1118 = vmatpush1.msra.mxu0 0.0
        %1119 = vmatprep.subr.mxu0 0.0
        %1120 = vmatpush1.msra.mxu0 0.0
        %1121 = vmatprep.subr.mxu0 0.0
        %1122 = vmatpush1.msra.mxu0 0.0
        %1123 = vmatprep.subr.mxu0 0.0
        %1124 = vmatpush1.msra.mxu0 0.0
        %1125 = vmatprep.subr.mxu0 0.0
        %1126 = vmatpush1.msra.mxu0 0.0
        %1127 = vmatprep.subr.mxu0 0.0
        %1128 = vmatpush1.msra.mxu0 0.0
        %1129 = vmatprep.subr.mxu0 0.0
        %1130 = vmatpush1.msra.mxu0 0.0
        %1131 = vmatprep.subr.mxu0 0.0
        %1132 = vmatpush1.msra.mxu0 0.0
        %1133 = vmatprep.subr.mxu0 0.0
        %1134 = vmatpush1.msra.mxu0 0.0
        %1135 = vmatprep.subr.mxu0 0.0
        %1136 = vmatpush1.msra.mxu0 0.0
        %1137 = vmatprep.subr.mxu0 0.0
        %1138 = vmatpush1.msra.mxu0 0.0
        %1139 = vmatprep.subr.mxu0 0.0
        %1140 = vmatpush1.msra.mxu0 0.0
        %1141 = vmatprep.subr.mxu0 0.0
        %1142 = vmatpush1.msra.mxu0 0.0
        %1143 = vmatprep.subr.mxu0 0.0
        %1144 = vmatpush1.msra.mxu0 0.0
        %1145 = vmatprep.subr.mxu0 0.0
        %1146 = vmatpush1.msra.mxu0 0.0
        %1147 = vmatprep.subr.mxu0 0.0
        %1148 = vmatpush1.msra.mxu0 0.0
        %1149 = vmatprep.subr.mxu0 0.0
        %1150 = vmatpush1.msra.mxu0 0.0
        %1151 = vmatprep.subr.mxu0 0.0
        %1152 = vmatpush1.msra.mxu0 0.0
        %1153 = vmatprep.subr.mxu0 0.0
        %1154 = vmatpush1.msra.mxu0 0.0
        %1155 = vmatprep.subr.mxu0 0.0
        %1156 = vmatpush1.msra.mxu0 0.0
        %1157 = vmatprep.mubr.f32.mxu0 0.0
        %1158 = vmatmul.mubr.f32.gmra.mrb[0].mxu0 %v1091
        %v1159 = vpop.f32.mrb[0].mxu0
        %v1160 = vadd.f32 0.0, %v1159
        %v1161 = vpop.f32.mrb[0].mxu0
        %1162 = vdwg.mxu0
        %v1163 = vadd.f32 %v1090, %v1160
        %v1164 = vxor.u32 %v1163, 2147483648
        %v1165 = vmul.f32 %v1164, 1.442695
        %v1166 = vpow.pop %v1165
        %v1167 = vadd.f32 %v1166, 1.0
        %v1168 = vrcp.pop %v1167
        %v1169 = vmul.f32 1.0, %v1168
        %v1170 = vtanh.pop %v1163
        %v1171 = vmul.f32 %v1169, %v1074
        %1173 = vrot.lane.b32.xlu0 %v1170, 64
        %v1174 = vpop.permute.xlu0 %1173
        %v1176 = vmul.f32 %v1169, %v1174
        %1178 = vrot.lane.b32.xlu0 %v1176, 32
        %v1179 = vpop.permute.xlu0 %1178
        %v1181 = vadd.f32 %v1171, %v1179
        %v1182 = vtanh.pop %v1181
        %1184 = vrot.lane.b32.xlu0 %v1182, 64
        %v1185 = vpop.permute.xlu0 %1184
        %v1187 = vmul.f32 %v1169, %v1185
        %1189 = vrot.lane.b32.xlu0 %v1187, 32
        %v1190 = vpop.permute.xlu0 %1189
        %s1192 = scalar_lea.vmem %s300, %s1088
        %1193 = vst.msk [vmem:[%s1192] sm:$0x3] %vm432, %v1190
        %1194 = vst.msk [vmem:[#allocation2] sm:$0x3] %vm432, %v1190
        %1196 = vrot.lane.b32.xlu0 %v1181, 96
        %v1197 = vpop.permute.xlu0 %1196
        %1199 = vst.msk [vmem:[#allocation3] sm:$0x3] %vm432, %v1197
        %s1200 = ssub.s32 1, %s17
        %s1201 = smul.u32 %s1200, %s18
        %s1202 = ssub.s32 0, %s18
        %s1203 = smul.u32 %s17, %s1202
        %s1204 = sadd.s32 %s1201, %s1203
        %s1205 = smul.u32 8, %s1204
        %p1206 = scmp.lt.s32.totalorder %s17, 1
        %s1207 = scalar_select %p1206, %s17, 1
        %p1208 = scmp.lt.s32.totalorder %s1205, 7
        %s1209 = scalar_select %p1208, %s1205, 7
        %s1210 = smul.addr %s1207, 8
        %s1211 = sadd.s32 %s1209, %s1210
        %s1212 = smul.addr %s1211, 2
        %s1213 = scalar_lea.vmem %s2, %s1212
        // Predicated region
        $region74: #{rnn_model_forward.6} parent=64 // pred_check
          %p1214 = pneg %p119
        $region75: #{rnn_model_forward.6} parent=64 // pred_check_branch
          %1216 = sbr.rel (%p1214) target = $region77
        $region76: #{rnn_model_forward.6} parent=64 // pred_region
          %s1217 = ssub.s32 1, %s17
          %s1218 = smul.u32 %s1217, %s18
          %s1219 = ssub.s32 0, %s18
          %s1220 = smul.u32 %s17, %s1219
          %s1221 = sadd.s32 %s1218, %s1220
          %s1222 = smul.u32 8, %s1221
        $region77: #{rnn_model_forward.6} parent=64 // pred_fallthru
          _
      $region65: #{rnn_model_forward.6} parent=5 // pred_fallthru
        _
      %p1223 = scmp.le.s32.totalorder 2, %s8
      // Predicated region
      $region78: #{rnn_model_forward.6} parent=5 // pred_check
        %p1224 = pneg %p1223
      $region79: #{rnn_model_forward.6} parent=5 // pred_check_branch
        %1226 = sbr.rel (%p1224) target = $region81
      $region80: #{rnn_model_forward.6} parent=5 // pred_region
        %s1227 = ssub.s32 %s8, 2
        // Predicated region
        $region82: #{rnn_model_forward.6} parent=80 // pred_check
          %p1228 = pneg %p125
        $region83: #{rnn_model_forward.6} parent=80 // pred_check_branch
          %1230 = sbr.rel (%p1228) target = $region85
        $region84: #{rnn_model_forward.6} parent=80 // pred_region
          %s1231 = ssub.s32 1, %s19
          %s1232 = smul.u32 %s1231, %s20
          %s1233 = ssub.s32 0, %s20
          %s1234 = smul.u32 %s19, %s1233
          %s1235 = sadd.s32 %s1232, %s1234
          %s1236 = smul.u32 8, %s1235
          %p1237 = scmp.lt.s32.totalorder %s19, 1
          %s1238 = scalar_select %p1237, %s19, 1
          %p1239 = scmp.lt.s32.totalorder %s1236, 7
          %s1240 = scalar_select %p1239, %s1236, 7
          %s1241 = smul.addr %s1238, 8
          %s1242 = sadd.s32 %s1240, %s1241
          %s1243 = smul.addr %s1242, 2
          %s1244 = scalar_lea.vmem %s2, %s1243
        $region85: #{rnn_model_forward.6} parent=80 // pred_fallthru
          _
      $region81: #{rnn_model_forward.6} parent=5 // pred_fallthru
        _
    $region6: #{rnn_model_forward.6} parent=1 // loop_footer
      %s12 = sadd.s32 1, %s8
    $region7: #{rnn_model_forward.6} parent=1 // loop_footer_branch
      %7 = sbr.rel target = $region3
    $region8: #{rnn_model_forward.6} parent=1 // loop_exit
      _

</llo_original>
